<compile_context>
chip_gen: v7x
topology: tpu7x:2x2x1
jax: 0.10.0
libtpu: 0.0.40
codegen_flags: <defaults>
</compile_context>

<pallas_src>
import functools

import jax
import jax.numpy as jnp
from jax.experimental import pallas as pl
from jax.experimental.pallas import tpu as pltpu

LANE = 128  # TPU lane width; all feature dims are zero-padded to multiples of this.


def _round_up(x, m):
    return ((x + m - 1) // m) * m


def _pad2d(a, rows, cols, dtype):
    out = jnp.zeros((rows, cols), dtype)
    return out.at[: a.shape[0], : a.shape[1]].set(a.astype(dtype))


def _largest_divisor_tile(n, candidates):
    """Largest candidate tile that divides n (n is a multiple of 128)."""
    for c in candidates:
        if c <= n and n % c == 0:
            return c
    return LANE


def _stack_weights(w_l, w_r, f_pad, h_pad):
    """Stack [[W_l];[W_r]] into a (2*f_pad, h_pad) bf16 operand (zero padded)."""
    w = jnp.zeros((2 * f_pad, h_pad), jnp.float32)
    w = w.at[: w_l.shape[0], : w_l.shape[1]].set(w_l)
    w = w.at[f_pad: f_pad + w_r.shape[0], : w_r.shape[1]].set(w_r)
    return w.astype(jnp.bfloat16)


# ----------------------------------------------------------------------------
# Kernel 1: one SAGEConv layer (mean aggregation + two linear maps + bias),
# optionally fused with ReLU.
#
#   grid = (row tile i, adjacency K tile k)          [k innermost, "arbitrary"]
#   per step :  acc(tile_i, F) += A_cnt[i, k] @ X[k]   (bf16 MXU, f32 accumulate)
#   k == 0   :  zero the accumulator                   (pl.when)
#   k == last:  mean = acc * inv_deg (f32)             (deferred normalization)
#               out[i] = [mean | x_i] @ [[W_l];[W_r]] + b   (single K=2F matmul)
#               (+ ReLU), cast to bf16
# ----------------------------------------------------------------------------
def sage_layer_kernel(a_ref, xk_ref, xi_ref, w_ref, b_ref, invd_ref,
                      o_ref, acc_ref, *, apply_relu):
    k = pl.program_id(1)

    @pl.when(k == 0)
    def _init():
        acc_ref[...] = jnp.zeros_like(acc_ref)

    # Sum of (count-weighted) neighbor features for this row tile, f32 accumulate.
    acc_ref[...] += jnp.dot(a_ref[...], xk_ref[...],
                            preferred_element_type=jnp.float32)

    @pl.when(k == pl.num_programs(1) - 1)
    def _finalize():
        # Deferred mean normalization: per-row 1/deg stays in f32.
        agg = (acc_ref[...] * invd_ref[...]).astype(jnp.bfloat16)
        # Fold the root/self term into one wide-K matmul: K = 2*F_pad (= 256)
        # exactly fills the 256-deep MXU on v6e/v7x; splits cleanly on v5e.
        lhs = jnp.concatenate([agg, xi_ref[...]], axis=1)
        out = jnp.dot(lhs, w_ref[...],
                      preferred_element_type=jnp.float32) + b_ref[...]
        if apply_relu:
            out = jnp.maximum(out, 0.0)
        o_ref[...] = out.astype(o_ref.dtype)


def sage_layer(a_cnt, inv_deg, x, w_stack, b, *, apply_relu, tile_i, tile_k):
    n_pad = a_cnt.shape[0]
    f_pad = x.shape[1]
    h_pad = w_stack.shape[1]
    grid = (n_pad // tile_i, n_pad // tile_k)
    n_row_tiles = n_pad // tile_i

    flops = 2 * n_pad * n_pad * f_pad + 2 * n_pad * (2 * f_pad) * h_pad
    # Advisory byte count reflects the true mem-bound cost: A streamed once,
    # neighbor-feature blocks re-streamed once per row tile.
    bytes_accessed = (
        n_pad * n_pad * a_cnt.dtype.itemsize       # adjacency stream
        + n_row_tiles * n_pad * f_pad * 2          # X[k] re-streamed per row tile
        + n_pad * f_pad * 2                        # X[i] (self rows)
        + 2 * f_pad * h_pad * 2 + h_pad * 4        # stacked weights + bias
        + n_pad * 4                                # inv_deg column
        + n_pad * h_pad * 2                        # output
    )

    return pl.pallas_call(
        functools.partial(sage_layer_kernel, apply_relu=apply_relu),
        out_shape=jax.ShapeDtypeStruct((n_pad, h_pad), jnp.bfloat16),
        grid=grid,
        in_specs=[
            pl.BlockSpec((tile_i, tile_k), lambda i, k: (i, k)),       # A counts
            pl.BlockSpec((tile_k, f_pad), lambda i, k: (k, 0)),        # X (neighbor rows)
            pl.BlockSpec((tile_i, f_pad), lambda i, k: (i, 0)),        # X (self rows)
            pl.BlockSpec((2 * f_pad, h_pad), lambda i, k: (0, 0)),     # [[W_l];[W_r]]
            pl.BlockSpec((1, h_pad), lambda i, k: (0, 0)),             # bias (f32)
            pl.BlockSpec((tile_i, 1), lambda i, k: (i, 0)),            # 1/deg (f32)
        ],
        out_specs=pl.BlockSpec((tile_i, h_pad), lambda i, k: (i, 0)),
        scratch_shapes=[pltpu.VMEM((tile_i, f_pad), jnp.float32)],
        compiler_params=pltpu.CompilerParams(
            dimension_semantics=("parallel", "arbitrary"),
            # Scoped VMEM cap (not physical capacity); double-buffered working
            # set at tile_i=1024/tile_k=512 is only a few MiB.
            vmem_limit_bytes=32 * 1024 * 1024,
        ),
        cost_estimate=pl.CostEstimate(flops=flops, transcendentals=0,
                                      bytes_accessed=bytes_accessed),
    )(a_cnt, x, x, w_stack, b, inv_deg)


# ----------------------------------------------------------------------------
# Kernel 2: link-predictor MLP on the lane-concatenated endpoint embeddings.
#   h     = relu([z_src | z_dst] @ W1 + b1)          (single wide-K MXU matmul)
#   logit = (1, H) x (tile_e, H)^T  -> (1, tile_e)   (lane-dense row output)
#   out   = sigmoid(logit + b2)                      -> (1, E_pad) slab
# ----------------------------------------------------------------------------
def link_pred_kernel(zc_ref, w1_ref, b1_ref, w2_ref, b2_ref, o_ref):
    h = jnp.dot(zc_ref[...], w1_ref[...],
                preferred_element_type=jnp.float32) + b1_ref[...]
    # TODO(synk): Dropout(p=0.5) layers are identity — inference path only.
    h = jnp.maximum(h, 0.0).astype(jnp.bfloat16)
    # Final Linear has a single output unit: contract it against the hidden
    # activations transposed so the result (and the store) is a lane-dense row
    # (bf16 MXU feeds, f32 accumulate) instead of a masked width-1 column.
    logit = jax.lax.dot_general(
        w2_ref[...], h, (((1,), (1,)), ((), ())),
        preferred_element_type=jnp.float32) + b2_ref[...]
    o_ref[...] = jax.nn.sigmoid(logit).astype(o_ref.dtype)


def link_predict(z_cat, w1, b1, w2_row, b2, *, tile_e):
    e_pad, two_out_pad = z_cat.shape
    hid_pad = w1.shape[1]
    grid = (e_pad // tile_e,)

    flops = 2 * e_pad * two_out_pad * hid_pad + 2 * e_pad * hid_pad
    bytes_accessed = (e_pad * two_out_pad * 2 + two_out_pad * hid_pad * 2
                      + hid_pad * 4 + hid_pad * 2 + 4 + e_pad * 4)

    return pl.pallas_call(
        link_pred_kernel,
        out_shape=jax.ShapeDtypeStruct((1, e_pad), jnp.float32),
        grid=grid,
        in_specs=[
            pl.BlockSpec((tile_e, two_out_pad), lambda e: (e, 0)),   # [z_src | z_dst]
            pl.BlockSpec((two_out_pad, hid_pad), lambda e: (0, 0)),  # W1 (merged halves)
            pl.BlockSpec((1, hid_pad), lambda e: (0, 0)),            # b1 (f32)
            pl.BlockSpec((1, hid_pad), lambda e: (0, 0)),            # w2 row (bf16)
            pl.BlockSpec((1, 1), lambda e: (0, 0)),                  # b2 scalar (f32)
        ],
        out_specs=pl.BlockSpec((1, tile_e), lambda e: (0, e)),
        compiler_params=pltpu.CompilerParams(
            dimension_semantics=("parallel",),
            vmem_limit_bytes=32 * 1024 * 1024,
        ),
        cost_estimate=pl.CostEstimate(flops=flops, transcendentals=e_pad,
                                      bytes_accessed=bytes_accessed),
    )(z_cat, w1, b1, w2_row, b2)


# ----------------------------------------------------------------------------
# Full forward pass (wrapper glue: adjacency build, lane padding, gathers).
# ----------------------------------------------------------------------------
def sage_link_predictor_forward(params, x, edge_index, pred_edge_index):
    n, in_ch = x.shape
    hid = params["w1_l"].shape[1]
    out_ch = params["w2_l"].shape[1]

    n_pad = _round_up(max(n, LANE), LANE)
    f_pad = _round_up(max(in_ch, LANE), LANE)
    h_pad = _round_up(max(hid, LANE), LANE)
    o_pad = _round_up(max(out_ch, LANE), LANE)

    # Decoupled tiles: reduction tile up to 512, row tile up to 1024, both the
    # largest divisors of n_pad (no 512-vs-128 fallback cliff).  Keep >= 2 row
    # tiles when possible so v7x's 2 TensorCores both get work.
    tile_k = _largest_divisor_tile(n_pad, (512, 384, 256, 128))
    row_cap = n_pad // 2 if n_pad >= 2 * LANE else n_pad
    tile_i = _largest_divisor_tile(
        n_pad, tuple(t for t in (1024, 768, 512, 384, 256, 128) if t <= row_cap))

    # --- adjacency (dense, un-normalized counts; normalization deferred) ----
    # Messages flow src -> dst, so row i = dst, neighbors = src (PyG SAGEConv).
    src = edge_index[0].astype(jnp.int32)
    dst = edge_index[1].astype(jnp.int32)
    n_edges = src.shape[0]
    # In-degree via an O(E) scatter (not an O(N^2) dense row-sum); 1/deg stays f32.
    deg = jnp.zeros((n_pad,), jnp.float32).at[dst].add(1.0)
    inv_deg = (1.0 / jnp.maximum(deg, 1.0)).reshape(n_pad, 1)
    # Edge counts scattered straight into bf16 (small integers are exact in bf16).
    # Padded rows/cols stay zero, so they never contribute to real nodes.
    # TODO(synk): on v7x store a_cnt as float8_e4m3 to halve the dominant HBM stream.
    # TODO(synk): for E << N^2 replace the dense adjacency with CSR aggregation
    # (row offsets / col indices via PrefetchScalarGridSpec + DMA-gathered rows).
    a_cnt = (jnp.zeros((n_pad, n_pad), jnp.bfloat16)
             .at[dst, src].add(jnp.ones((n_edges,), jnp.bfloat16)))

    # --- lane-pad features / weights; bf16 MXU operands, f32 biases ---------
    x_p = _pad2d(x, n_pad, f_pad, jnp.bfloat16)
    w1 = _stack_weights(params["w1_l"], params["w1_r"], f_pad, h_pad)
    b1 = _pad2d(params["b1"].reshape(1, -1), 1, h_pad, jnp.float32)
    w2 = _stack_weights(params["w2_l"], params["w2_r"], h_pad, o_pad)
    b2 = _pad2d(params["b2"].reshape(1, -1), 1, o_pad, jnp.float32)

    # encode: conv1 -> ReLU (fused) -> dropout(identity, eval) -> conv2
    h = sage_layer(a_cnt, inv_deg, x_p, w1, b1,
                   apply_relu=True, tile_i=tile_i, tile_k=tile_k)
    z = sage_layer(a_cnt, inv_deg, h, w2, b2,
                   apply_relu=False, tile_i=tile_i, tile_k=tile_k)

    # decode: gather endpoints, lane-concatenate, score with the fused MLP kernel.
    # TODO(synk): the endpoint gather could move into the kernel via
    # PrefetchScalarGridSpec + pl.Element row gather to avoid this HBM round trip.
    e_pred = pred_edge_index.shape[1]
    e_pad = _round_up(max(e_pred, LANE), LANE)
    tile_e = _largest_divisor_tile(e_pad, (2048, 1024, 512, 256, 128))
    row = jnp.zeros((e_pad,), jnp.int32).at[:e_pred].set(
        pred_edge_index[0].astype(jnp.int32))
    col = jnp.zeros((e_pad,), jnp.int32).at[:e_pred].set(
        pred_edge_index[1].astype(jnp.int32))
    z_cat = jnp.concatenate([z[row], z[col]], axis=1)  # (e_pad, 2*o_pad), bf16

    lp_w1 = jnp.zeros((2 * o_pad, h_pad), jnp.float32)
    lp_w1 = lp_w1.at[:out_ch, :hid].set(params["lp_w1"][:out_ch])
    lp_w1 = lp_w1.at[o_pad:o_pad + out_ch, :hid].set(params["lp_w1"][out_ch:])
    lp_w1 = lp_w1.astype(jnp.bfloat16)
    lp_b1 = _pad2d(params["lp_b1"].reshape(1, -1), 1, h_pad, jnp.float32)
    lp_w2 = _pad2d(params["lp_w2"].T, 1, h_pad, jnp.bfloat16)  # (1, h_pad) row
    lp_b2 = params["lp_b2"].reshape(1, 1).astype(jnp.float32)

    probs = link_predict(z_cat, lp_w1, lp_b1, lp_w2, lp_b2, tile_e=tile_e)
    # Padded pred edges produce garbage scores in the (1, e_pad) slab; slice
    # them off before returning (never reduce over the padded slab directly).
    return probs[0, :e_pred].reshape(e_pred, 1)


def init_params(key, in_channels, hidden_channels, out_channels):
    ks = jax.random.split(key, 8)
    scale = 0.1
    return {
        # SAGEConv1: lin_l (aggregated, with bias), lin_r (root, no bias)
        "w1_l": scale * jax.random.normal(ks[0], (in_channels, hidden_channels), jnp.float32),
        "w1_r": scale * jax.random.normal(ks[1], (in_channels, hidden_channels), jnp.float32),
        "b1": scale * jax.random.normal(ks[2], (hidden_channels,), jnp.float32),
        # SAGEConv2
        "w2_l": scale * jax.random.normal(ks[3], (hidden_channels, out_channels), jnp.float32),
        "w2_r": scale * jax.random.normal(ks[4], (hidden_channels, out_channels), jnp.float32),
        "b2": scale * jax.random.normal(ks[5], (out_channels,), jnp.float32),
        # link predictor: Linear(2*out -> hidden), ReLU, Dropout(identity), Linear(hidden -> 1)
        "lp_w1": scale * jax.random.normal(ks[6], (2 * out_channels, hidden_channels), jnp.float32),
        "lp_b1": jnp.zeros((hidden_channels,), jnp.float32),
        "lp_w2": scale * jax.random.normal(ks[7], (hidden_channels, 1), jnp.float32),
        "lp_b2": jnp.zeros((1,), jnp.float32),
    }


if __name__ == "__main__":
    key = jax.random.PRNGKey(0)
    k_x, k_e, k_p, k_w = jax.random.split(key, 4)

    N = 16            # nodes
    IN_CH = 8         # in_channels
    HID = 16          # hidden_channels
    OUT_CH = 8        # out_channels
    E = 32            # message-passing edges
    E_PRED = 8        # edges to score

    x = jax.random.normal(k_x, (N, IN_CH), jnp.float32)
    edge_index = jax.random.randint(k_e, (2, E), 0, N, dtype=jnp.int32)
    pred_edge_index = jax.random.randint(k_p, (2, E_PRED), 0, N, dtype=jnp.int32)

    params = init_params(k_w, IN_CH, HID, OUT_CH)

    fwd = jax.jit(sage_link_predictor_forward)
    link_pred = fwd(params, x, edge_index, pred_edge_index)
    jax.block_until_ready(link_pred)

    assert link_pred.shape == (E_PRED, 1)
    assert bool(jnp.all(jnp.isfinite(link_pred)))
    assert bool(jnp.all((link_pred >= 0.0) & (link_pred <= 1.0)))
    print("KERNEL_OK")
</pallas_src>

<mosaic_0001>
module attributes {stable_mosaic.version = 11 : i64} {
  func.func private @main(%arg0: i32) attributes {dimension_semantics = [#tpu.dimension_semantics<core_parallel>], iteration_bounds = array<i64: 2>, tpu.core_type = #tpu.core_type<sc_scalar_subcore>, window_params = []} {
    return
  }
}

module attributes {stable_mosaic.version = 11 : i64} {
  func.func private @main(%arg0: i32) attributes {dimension_semantics = [#tpu.dimension_semantics<core_parallel>], iteration_bounds = array<i64: 2>, tpu.core_type = #tpu.core_type<sc_scalar_subcore>, window_params = []} {
    return
  }
}

module attributes {stable_mosaic.version = 11 : i64} {
  func.func @sage_layer_kernel(%arg0: i32, %arg1: i32, %arg2: memref<128x128xbf16, #tpu.memory_space<vmem>>, %arg3: memref<128x128xbf16, #tpu.memory_space<vmem>>, %arg4: memref<128x128xbf16, #tpu.memory_space<vmem>>, %arg5: memref<256x128xbf16, #tpu.memory_space<vmem>>, %arg6: memref<1x128xf32, #tpu.memory_space<vmem>>, %arg7: memref<128x1xf32, #tpu.memory_space<vmem>>, %arg8: memref<128x128xbf16, #tpu.memory_space<vmem>>, %arg9: memref<128x128xf32, #tpu.memory_space<vmem>>) attributes {dimension_semantics = [#tpu.dimension_semantics<parallel>, #tpu.dimension_semantics<arbitrary>], iteration_bounds = array<i64: 1, 1>, scalar_prefetch = 0 : i64, scratch_operands = 1 : i64, tpu.core_type = #tpu.core_type<tc>, window_params = [{transform_indices = @transform_0, window_bounds = array<i64: 128, 128>}, {transform_indices = @transform_1, window_bounds = array<i64: 128, 128>}, {transform_indices = @transform_2, window_bounds = array<i64: 128, 128>}, {pipeline_mode = #tpu.pipeline_mode<synchronous>, transform_indices = @transform_3, window_bounds = array<i64: 256, 128>}, {pipeline_mode = #tpu.pipeline_mode<synchronous>, transform_indices = @transform_4, window_bounds = array<i64: 1, 128>}, {transform_indices = @transform_5, window_bounds = array<i64: 128, 1>}, {transform_indices = @transform_6, window_bounds = array<i64: 128, 128>}]} {
    %c0_i32 = arith.constant 0 : i32
    %0 = arith.cmpi eq, %arg1, %c0_i32 : i32
    %1 = arith.extui %0 : i1 to i32
    %c0_i32_0 = arith.constant 0 : i32
    %2 = arith.cmpi ne, %1, %c0_i32_0 : i32
    scf.if %2 {
      %cst_10 = arith.constant 0.000000e+00 : f32
      %12 = vector.broadcast %cst_10 : f32 to vector<128x128xf32>
      %c0_11 = arith.constant 0 : index
      %c0_12 = arith.constant 0 : index
      %13 = vector.load %arg9[%c0_11, %c0_12] : memref<128x128xf32, #tpu.memory_space<vmem>>, vector<128x128xf32>
      tpu.vector_store %arg9[%c0_11, %c0_12], %12 {strides = array<i32>} : memref<128x128xf32, #tpu.memory_space<vmem>>, vector<128x128xf32>,
    } else {
    }
    %c0 = arith.constant 0 : index
    %c0_1 = arith.constant 0 : index
    %3 = vector.load %arg9[%c0, %c0_1] : memref<128x128xf32, #tpu.memory_space<vmem>>, vector<128x128xf32>
    %c0_2 = arith.constant 0 : index
    %c0_3 = arith.constant 0 : index
    %4 = vector.load %arg2[%c0_2, %c0_3] : memref<128x128xbf16, #tpu.memory_space<vmem>>, vector<128x128xbf16>
    %c0_4 = arith.constant 0 : index
    %c0_5 = arith.constant 0 : index
    %5 = vector.load %arg3[%c0_4, %c0_5] : memref<128x128xbf16, #tpu.memory_space<vmem>>, vector<128x128xbf16>
    %cst = arith.constant dense<0.000000e+00> : vector<128x128xf32>
    %6 = tpu.matmul %4, %5, %cst {dimension_numbers = #tpu.dot_dimension_numbers<[1], [0], [0], [1], [0, 0, 1, 1], [], []>} : vector<128x128xbf16>, vector<128x128xbf16>, vector<128x128xf32> -> vector<128x128xf32>
    %7 = arith.addf %3, %6 : vector<128x128xf32>
    %c0_6 = arith.constant 0 : index
    %c0_7 = arith.constant 0 : index
    %8 = vector.load %arg9[%c0_6, %c0_7] : memref<128x128xf32, #tpu.memory_space<vmem>>, vector<128x128xf32>
    tpu.vector_store %arg9[%c0_6, %c0_7], %7 {strides = array<i32>} : memref<128x128xf32, #tpu.memory_space<vmem>>, vector<128x128xf32>,
    %c0_i32_8 = arith.constant 0 : i32
    %9 = arith.cmpi eq, %arg1, %c0_i32_8 : i32
    %10 = arith.extui %9 : i1 to i32
    %c0_i32_9 = arith.constant 0 : i32
    %11 = arith.cmpi ne, %10, %c0_i32_9 : i32
    scf.if %11 {
      %c0_10 = arith.constant 0 : index
      %c0_11 = arith.constant 0 : index
      %12 = vector.load %arg9[%c0_10, %c0_11] : memref<128x128xf32, #tpu.memory_space<vmem>>, vector<128x128xf32>
      %c0_12 = arith.constant 0 : index
      %c0_13 = arith.constant 0 : index
      %13 = vector.load %arg7[%c0_12, %c0_13] : memref<128x1xf32, #tpu.memory_space<vmem>>, vector<128x1xf32>
      %14 = vector.broadcast %13 : vector<128x1xf32> to vector<128x128xf32>
      %15 = arith.mulf %12, %14 : vector<128x128xf32>
      %16 = arith.truncf %15 : vector<128x128xf32> to vector<128x128xbf16>
      %c0_14 = arith.constant 0 : index
      %c0_15 = arith.constant 0 : index
      %17 = vector.load %arg4[%c0_14, %c0_15] : memref<128x128xbf16, #tpu.memory_space<vmem>>, vector<128x128xbf16>
      %18 = tpu.concatenate %16, %17 in 1 : vector<128x128xbf16>, vector<128x128xbf16> -> vector<128x256xbf16>
      %c0_16 = arith.constant 0 : index
      %c0_17 = arith.constant 0 : index
      %19 = vector.load %arg5[%c0_16, %c0_17] : memref<256x128xbf16, #tpu.memory_space<vmem>>, vector<256x128xbf16>
      %cst_18 = arith.constant dense<0.000000e+00> : vector<128x128xf32>
      %20 = tpu.matmul %18, %19, %cst_18 {dimension_numbers = #tpu.dot_dimension_numbers<[1], [0], [0], [1], [0, 0, 1, 1], [], []>} : vector<128x256xbf16>, vector<256x128xbf16>, vector<128x128xf32> -> vector<128x128xf32>
      %c0_19 = arith.constant 0 : index
      %c0_20 = arith.constant 0 : index
      %21 = vector.load %arg6[%c0_19, %c0_20] : memref<1x128xf32, #tpu.memory_space<vmem>>, vector<1x128xf32>
      %22 = vector.broadcast %21 : vector<1x128xf32> to vector<128x128xf32>
      %23 = arith.addf %20, %22 : vector<128x128xf32>
      %cst_21 = arith.constant 0.000000e+00 : f32
      %24 = vector.broadcast %cst_21 : f32 to vector<128x128xf32>
      %25 = arith.maximumf %23, %24 : vector<128x128xf32>
      %26 = arith.truncf %25 : vector<128x128xf32> to vector<128x128xbf16>
      %c0_22 = arith.constant 0 : index
      %c0_23 = arith.constant 0 : index
      %27 = vector.load %arg8[%c0_22, %c0_23] : memref<128x128xbf16, #tpu.memory_space<vmem>>, vector<128x128xbf16>
      tpu.vector_store %arg8[%c0_22, %c0_23], %26 {strides = array<i32>} : memref<128x128xbf16, #tpu.memory_space<vmem>>, vector<128x128xbf16>,
    } else {
    }
    return
  }
  func.func @transform_0(%arg0: i32, %arg1: i32) -> (i32, i32) {
    %c0_i32 = arith.constant 0 : i32
    return %arg0, %arg1 : i32, i32
  }
  func.func @transform_1(%arg0: i32, %arg1: i32) -> (i32, i32) {
    %c0_i32 = arith.constant 0 : i32
    %c0_i32_0 = arith.constant 0 : i32
    return %arg1, %c0_i32 : i32, i32
  }
  func.func @transform_2(%arg0: i32, %arg1: i32) -> (i32, i32) {
    %c0_i32 = arith.constant 0 : i32
    %c0_i32_0 = arith.constant 0 : i32
    return %arg0, %c0_i32 : i32, i32
  }
  func.func @transform_3(%arg0: i32, %arg1: i32) -> (i32, i32) {
    %c0_i32 = arith.constant 0 : i32
    %c0_i32_0 = arith.constant 0 : i32
    %c0_i32_1 = arith.constant 0 : i32
    return %c0_i32, %c0_i32_0 : i32, i32
  }
  func.func @transform_4(%arg0: i32, %arg1: i32) -> (i32, i32) {
    %c0_i32 = arith.constant 0 : i32
    %c0_i32_0 = arith.constant 0 : i32
    %c0_i32_1 = arith.constant 0 : i32
    return %c0_i32, %c0_i32_0 : i32, i32
  }
  func.func @transform_5(%arg0: i32, %arg1: i32) -> (i32, i32) {
    %c0_i32 = arith.constant 0 : i32
    %c0_i32_0 = arith.constant 0 : i32
    return %arg0, %c0_i32 : i32, i32
  }
  func.func @transform_6(%arg0: i32, %arg1: i32) -> (i32, i32) {
    %c0_i32 = arith.constant 0 : i32
    %c0_i32_0 = arith.constant 0 : i32
    return %arg0, %c0_i32 : i32, i32
  }
}

module attributes {stable_mosaic.version = 11 : i64} {
  func.func @sage_layer_kernel(%arg0: i32, %arg1: i32, %arg2: memref<128x128xbf16, #tpu.memory_space<vmem>>, %arg3: memref<128x128xbf16, #tpu.memory_space<vmem>>, %arg4: memref<128x128xbf16, #tpu.memory_space<vmem>>, %arg5: memref<256x128xbf16, #tpu.memory_space<vmem>>, %arg6: memref<1x128xf32, #tpu.memory_space<vmem>>, %arg7: memref<128x1xf32, #tpu.memory_space<vmem>>, %arg8: memref<128x128xbf16, #tpu.memory_space<vmem>>, %arg9: memref<128x128xf32, #tpu.memory_space<vmem>>) attributes {dimension_semantics = [#tpu.dimension_semantics<parallel>, #tpu.dimension_semantics<arbitrary>], iteration_bounds = array<i64: 1, 1>, scalar_prefetch = 0 : i64, scratch_operands = 1 : i64, tpu.core_type = #tpu.core_type<tc>, window_params = [{transform_indices = @transform_0, window_bounds = array<i64: 128, 128>}, {transform_indices = @transform_1, window_bounds = array<i64: 128, 128>}, {transform_indices = @transform_2, window_bounds = array<i64: 128, 128>}, {pipeline_mode = #tpu.pipeline_mode<synchronous>, transform_indices = @transform_3, window_bounds = array<i64: 256, 128>}, {pipeline_mode = #tpu.pipeline_mode<synchronous>, transform_indices = @transform_4, window_bounds = array<i64: 1, 128>}, {transform_indices = @transform_5, window_bounds = array<i64: 128, 1>}, {transform_indices = @transform_6, window_bounds = array<i64: 128, 128>}]} {
    %c0_i32 = arith.constant 0 : i32
    %0 = arith.cmpi eq, %arg1, %c0_i32 : i32
    %1 = arith.extui %0 : i1 to i32
    %c0_i32_0 = arith.constant 0 : i32
    %2 = arith.cmpi ne, %1, %c0_i32_0 : i32
    scf.if %2 {
      %cst_10 = arith.constant 0.000000e+00 : f32
      %12 = vector.broadcast %cst_10 : f32 to vector<128x128xf32>
      %c0_11 = arith.constant 0 : index
      %c0_12 = arith.constant 0 : index
      %13 = vector.load %arg9[%c0_11, %c0_12] : memref<128x128xf32, #tpu.memory_space<vmem>>, vector<128x128xf32>
      tpu.vector_store %arg9[%c0_11, %c0_12], %12 {strides = array<i32>} : memref<128x128xf32, #tpu.memory_space<vmem>>, vector<128x128xf32>,
    } else {
    }
    %c0 = arith.constant 0 : index
    %c0_1 = arith.constant 0 : index
    %3 = vector.load %arg9[%c0, %c0_1] : memref<128x128xf32, #tpu.memory_space<vmem>>, vector<128x128xf32>
    %c0_2 = arith.constant 0 : index
    %c0_3 = arith.constant 0 : index
    %4 = vector.load %arg2[%c0_2, %c0_3] : memref<128x128xbf16, #tpu.memory_space<vmem>>, vector<128x128xbf16>
    %c0_4 = arith.constant 0 : index
    %c0_5 = arith.constant 0 : index
    %5 = vector.load %arg3[%c0_4, %c0_5] : memref<128x128xbf16, #tpu.memory_space<vmem>>, vector<128x128xbf16>
    %cst = arith.constant dense<0.000000e+00> : vector<128x128xf32>
    %6 = tpu.matmul %4, %5, %cst {dimension_numbers = #tpu.dot_dimension_numbers<[1], [0], [0], [1], [0, 0, 1, 1], [], []>} : vector<128x128xbf16>, vector<128x128xbf16>, vector<128x128xf32> -> vector<128x128xf32>
    %7 = arith.addf %3, %6 : vector<128x128xf32>
    %c0_6 = arith.constant 0 : index
    %c0_7 = arith.constant 0 : index
    %8 = vector.load %arg9[%c0_6, %c0_7] : memref<128x128xf32, #tpu.memory_space<vmem>>, vector<128x128xf32>
    tpu.vector_store %arg9[%c0_6, %c0_7], %7 {strides = array<i32>} : memref<128x128xf32, #tpu.memory_space<vmem>>, vector<128x128xf32>,
    %c0_i32_8 = arith.constant 0 : i32
    %9 = arith.cmpi eq, %arg1, %c0_i32_8 : i32
    %10 = arith.extui %9 : i1 to i32
    %c0_i32_9 = arith.constant 0 : i32
    %11 = arith.cmpi ne, %10, %c0_i32_9 : i32
    scf.if %11 {
      %c0_10 = arith.constant 0 : index
      %c0_11 = arith.constant 0 : index
      %12 = vector.load %arg9[%c0_10, %c0_11] : memref<128x128xf32, #tpu.memory_space<vmem>>, vector<128x128xf32>
      %c0_12 = arith.constant 0 : index
      %c0_13 = arith.constant 0 : index
      %13 = vector.load %arg7[%c0_12, %c0_13] : memref<128x1xf32, #tpu.memory_space<vmem>>, vector<128x1xf32>
      %14 = vector.broadcast %13 : vector<128x1xf32> to vector<128x128xf32>
      %15 = arith.mulf %12, %14 : vector<128x128xf32>
      %16 = arith.truncf %15 : vector<128x128xf32> to vector<128x128xbf16>
      %c0_14 = arith.constant 0 : index
      %c0_15 = arith.constant 0 : index
      %17 = vector.load %arg4[%c0_14, %c0_15] : memref<128x128xbf16, #tpu.memory_space<vmem>>, vector<128x128xbf16>
      %18 = tpu.concatenate %16, %17 in 1 : vector<128x128xbf16>, vector<128x128xbf16> -> vector<128x256xbf16>
      %c0_16 = arith.constant 0 : index
      %c0_17 = arith.constant 0 : index
      %19 = vector.load %arg5[%c0_16, %c0_17] : memref<256x128xbf16, #tpu.memory_space<vmem>>, vector<256x128xbf16>
      %cst_18 = arith.constant dense<0.000000e+00> : vector<128x128xf32>
      %20 = tpu.matmul %18, %19, %cst_18 {dimension_numbers = #tpu.dot_dimension_numbers<[1], [0], [0], [1], [0, 0, 1, 1], [], []>} : vector<128x256xbf16>, vector<256x128xbf16>, vector<128x128xf32> -> vector<128x128xf32>
      %c0_19 = arith.constant 0 : index
      %c0_20 = arith.constant 0 : index
      %21 = vector.load %arg6[%c0_19, %c0_20] : memref<1x128xf32, #tpu.memory_space<vmem>>, vector<1x128xf32>
      %22 = vector.broadcast %21 : vector<1x128xf32> to vector<128x128xf32>
      %23 = arith.addf %20, %22 : vector<128x128xf32>
      %24 = arith.truncf %23 : vector<128x128xf32> to vector<128x128xbf16>
      %c0_21 = arith.constant 0 : index
      %c0_22 = arith.constant 0 : index
      %25 = vector.load %arg8[%c0_21, %c0_22] : memref<128x128xbf16, #tpu.memory_space<vmem>>, vector<128x128xbf16>
      tpu.vector_store %arg8[%c0_21, %c0_22], %24 {strides = array<i32>} : memref<128x128xbf16, #tpu.memory_space<vmem>>, vector<128x128xbf16>,
    } else {
    }
    return
  }
  func.func @transform_0(%arg0: i32, %arg1: i32) -> (i32, i32) {
    %c0_i32 = arith.constant 0 : i32
    return %arg0, %arg1 : i32, i32
  }
  func.func @transform_1(%arg0: i32, %arg1: i32) -> (i32, i32) {
    %c0_i32 = arith.constant 0 : i32
    %c0_i32_0 = arith.constant 0 : i32
    return %arg1, %c0_i32 : i32, i32
  }
  func.func @transform_2(%arg0: i32, %arg1: i32) -> (i32, i32) {
    %c0_i32 = arith.constant 0 : i32
    %c0_i32_0 = arith.constant 0 : i32
    return %arg0, %c0_i32 : i32, i32
  }
  func.func @transform_3(%arg0: i32, %arg1: i32) -> (i32, i32) {
    %c0_i32 = arith.constant 0 : i32
    %c0_i32_0 = arith.constant 0 : i32
    %c0_i32_1 = arith.constant 0 : i32
    return %c0_i32, %c0_i32_0 : i32, i32
  }
  func.func @transform_4(%arg0: i32, %arg1: i32) -> (i32, i32) {
    %c0_i32 = arith.constant 0 : i32
    %c0_i32_0 = arith.constant 0 : i32
    %c0_i32_1 = arith.constant 0 : i32
    return %c0_i32, %c0_i32_0 : i32, i32
  }
  func.func @transform_5(%arg0: i32, %arg1: i32) -> (i32, i32) {
    %c0_i32 = arith.constant 0 : i32
    %c0_i32_0 = arith.constant 0 : i32
    return %arg0, %c0_i32 : i32, i32
  }
  func.func @transform_6(%arg0: i32, %arg1: i32) -> (i32, i32) {
    %c0_i32 = arith.constant 0 : i32
    %c0_i32_0 = arith.constant 0 : i32
    return %arg0, %c0_i32 : i32, i32
  }
}

module attributes {stable_mosaic.version = 11 : i64} {
  func.func @link_pred_kernel(%arg0: i32, %arg1: memref<128x256xbf16, #tpu.memory_space<vmem>>, %arg2: memref<256x128xbf16, #tpu.memory_space<vmem>>, %arg3: memref<1x128xf32, #tpu.memory_space<vmem>>, %arg4: memref<1x128xbf16, #tpu.memory_space<vmem>>, %arg5: memref<1x1xf32, #tpu.memory_space<vmem>>, %arg6: memref<1x128xf32, #tpu.memory_space<vmem>>) attributes {dimension_semantics = [#tpu.dimension_semantics<parallel>], iteration_bounds = array<i64: 1>, scalar_prefetch = 0 : i64, scratch_operands = 0 : i64, tpu.core_type = #tpu.core_type<tc>, window_params = [{transform_indices = @transform_0, window_bounds = array<i64: 128, 256>}, {pipeline_mode = #tpu.pipeline_mode<synchronous>, transform_indices = @transform_1, window_bounds = array<i64: 256, 128>}, {pipeline_mode = #tpu.pipeline_mode<synchronous>, transform_indices = @transform_2, window_bounds = array<i64: 1, 128>}, {pipeline_mode = #tpu.pipeline_mode<synchronous>, transform_indices = @transform_3, window_bounds = array<i64: 1, 128>}, {pipeline_mode = #tpu.pipeline_mode<synchronous>, transform_indices = @transform_4, window_bounds = array<i64: 1, 1>}, {transform_indices = @transform_5, window_bounds = array<i64: 1, 128>}]} {
    %c0 = arith.constant 0 : index
    %c0_0 = arith.constant 0 : index
    %0 = vector.load %arg1[%c0, %c0_0] : memref<128x256xbf16, #tpu.memory_space<vmem>>, vector<128x256xbf16>
    %c0_1 = arith.constant 0 : index
    %c0_2 = arith.constant 0 : index
    %1 = vector.load %arg2[%c0_1, %c0_2] : memref<256x128xbf16, #tpu.memory_space<vmem>>, vector<256x128xbf16>
    %cst = arith.constant dense<0.000000e+00> : vector<128x128xf32>
    %2 = tpu.matmul %0, %1, %cst {dimension_numbers = #tpu.dot_dimension_numbers<[1], [0], [0], [1], [0, 0, 1, 1], [], []>} : vector<128x256xbf16>, vector<256x128xbf16>, vector<128x128xf32> -> vector<128x128xf32>
    %c0_3 = arith.constant 0 : index
    %c0_4 = arith.constant 0 : index
    %3 = vector.load %arg3[%c0_3, %c0_4] : memref<1x128xf32, #tpu.memory_space<vmem>>, vector<1x128xf32>
    %4 = vector.broadcast %3 : vector<1x128xf32> to vector<128x128xf32>
    %5 = arith.addf %2, %4 : vector<128x128xf32>
    %cst_5 = arith.constant 0.000000e+00 : f32
    %6 = vector.broadcast %cst_5 : f32 to vector<128x128xf32>
    %7 = arith.maximumf %5, %6 : vector<128x128xf32>
    %8 = arith.truncf %7 : vector<128x128xf32> to vector<128x128xbf16>
    %c0_6 = arith.constant 0 : index
    %c0_7 = arith.constant 0 : index
    %9 = vector.load %arg4[%c0_6, %c0_7] : memref<1x128xbf16, #tpu.memory_space<vmem>>, vector<1x128xbf16>
    %cst_8 = arith.constant dense<0.000000e+00> : vector<1x128xf32>
    %10 = tpu.matmul %9, %8, %cst_8 {dimension_numbers = #tpu.dot_dimension_numbers<[1], [1], [0], [0], [0, 0, 1, 0], [], []>} : vector<1x128xbf16>, vector<128x128xbf16>, vector<1x128xf32> -> vector<1x128xf32>
    %c0_9 = arith.constant 0 : index
    %c0_10 = arith.constant 0 : index
    %11 = vector.load %arg5[%c0_9, %c0_10] : memref<1x1xf32, #tpu.memory_space<vmem>>, vector<1x1xf32>
    %12 = vector.broadcast %11 : vector<1x1xf32> to vector<1x128xf32>
    %13 = arith.addf %10, %12 : vector<1x128xf32>
    %14 = arith.negf %13 : vector<1x128xf32>
    %15 = math.exp %14 : vector<1x128xf32>
    %cst_11 = arith.constant 1.000000e+00 : f32
    %16 = vector.broadcast %cst_11 : f32 to vector<1x128xf32>
    %17 = arith.addf %16, %15 : vector<1x128xf32>
    %18 = arith.divf %16, %17 : vector<1x128xf32>
    %c0_12 = arith.constant 0 : index
    %c0_13 = arith.constant 0 : index
    %19 = vector.load %arg6[%c0_12, %c0_13] : memref<1x128xf32, #tpu.memory_space<vmem>>, vector<1x128xf32>
    tpu.vector_store %arg6[%c0_12, %c0_13], %18 {strides = array<i32>} : memref<1x128xf32, #tpu.memory_space<vmem>>, vector<1x128xf32>,
    return
  }
  func.func @transform_0(%arg0: i32) -> (i32, i32) {
    %c0_i32 = arith.constant 0 : i32
    %c0_i32_0 = arith.constant 0 : i32
    return %arg0, %c0_i32 : i32, i32
  }
  func.func @transform_1(%arg0: i32) -> (i32, i32) {
    %c0_i32 = arith.constant 0 : i32
    %c0_i32_0 = arith.constant 0 : i32
    %c0_i32_1 = arith.constant 0 : i32
    return %c0_i32, %c0_i32_0 : i32, i32
  }
  func.func @transform_2(%arg0: i32) -> (i32, i32) {
    %c0_i32 = arith.constant 0 : i32
    %c0_i32_0 = arith.constant 0 : i32
    %c0_i32_1 = arith.constant 0 : i32
    return %c0_i32, %c0_i32_0 : i32, i32
  }
  func.func @transform_3(%arg0: i32) -> (i32, i32) {
    %c0_i32 = arith.constant 0 : i32
    %c0_i32_0 = arith.constant 0 : i32
    %c0_i32_1 = arith.constant 0 : i32
    return %c0_i32, %c0_i32_0 : i32, i32
  }
  func.func @transform_4(%arg0: i32) -> (i32, i32) {
    %c0_i32 = arith.constant 0 : i32
    %c0_i32_0 = arith.constant 0 : i32
    %c0_i32_1 = arith.constant 0 : i32
    return %c0_i32, %c0_i32_0 : i32, i32
  }
  func.func @transform_5(%arg0: i32) -> (i32, i32) {
    %c0_i32 = arith.constant 0 : i32
    %c0_i32_0 = arith.constant 0 : i32
    return %c0_i32, %arg0 : i32, i32
  }
}

</mosaic_0001>

<llo_original>
// kernel: sage_link_predictor_forward.3
$region0: #{sage_link_predictor_forward.3}
  #allocation0 [shape = 'u32[]', space=smem, size = 0x4, offset = 0x4, fixed_abs, tag = 'smem constant byte address 0x4 - core index']
  #allocation1 [shape = 'u32[144,128]{1,0:T(1,128)}', space=vmem, size = 0x12000, scoped, tag = 'internal scratch']
  #allocation2 [shape = 'f32[128,128]{1,0:T(8,128)}', space=vmem, size = 0x10000, scoped, tag = 'scratch operand']
  %s0 = inlined_call_operand.vmem [shape: bf16[128,128], index: 0, kind: input, shape index: {}]
  %s1 = inlined_call_operand.vmem [shape: bf16[128,128], index: 1, kind: input, shape index: {}, may-alias: {1,2}]
  %s2 = inlined_call_operand.vmem [shape: bf16[128,128], index: 2, kind: input, shape index: {}, may-alias: {1,2}]
  %s3 = inlined_call_operand.vmem [shape: bf16[256,128], index: 3, kind: input, shape index: {}]
  %s4 = inlined_call_operand.vmem [shape: f32[1,128], index: 4, kind: input, shape index: {}]
  %s5 = inlined_call_operand.vmem [shape: f32[128,1], index: 5, kind: input, shape index: {}]
  %s6 = inlined_call_operand.vmem [shape: bf16[128,128], index: 6, kind: output, shape index: {}]
  %s7 = sld [smem:[#allocation0]]
  $region42: #{sage_link_predictor_forward.3} parent=0
    _
  %s9 = ssub.s32 1, %s7
  %s10 = scalar_select 0, %s9, %s7
  // Predicated region
  $region2: #{sage_link_predictor_forward.3} parent=0 // pred_check
    _
  $region3: #{sage_link_predictor_forward.3} parent=0 // pred_check_branch
    %12 = sbr.rel (0) target = $region5
  $region4: #{sage_link_predictor_forward.3} parent=0 // pred_region
    _
  $region5: #{sage_link_predictor_forward.3} parent=0 // pred_fallthru
    _
  // Predicated region
  $region6: #{sage_link_predictor_forward.3} parent=0 // pred_check
    _
  $region7: #{sage_link_predictor_forward.3} parent=0 // pred_check_branch
    %14 = sbr.rel (0) target = $region9
  $region8: #{sage_link_predictor_forward.3} parent=0 // pred_region
    _
  $region9: #{sage_link_predictor_forward.3} parent=0 // pred_fallthru
    _
  // Predicated region
  $region10: #{sage_link_predictor_forward.3} parent=0 // pred_check
    _
  $region11: #{sage_link_predictor_forward.3} parent=0 // pred_check_branch
    %16 = sbr.rel (0) target = $region13
  $region12: #{sage_link_predictor_forward.3} parent=0 // pred_region
    _
  $region13: #{sage_link_predictor_forward.3} parent=0 // pred_fallthru
    _
  // Predicated region
  $region14: #{sage_link_predictor_forward.3} parent=0 // pred_check
    _
  $region15: #{sage_link_predictor_forward.3} parent=0 // pred_check_branch
    %18 = sbr.rel (0) target = $region17
  $region16: #{sage_link_predictor_forward.3} parent=0 // pred_region
    _
  $region17: #{sage_link_predictor_forward.3} parent=0 // pred_fallthru
    _
  // Predicated region
  $region18: #{sage_link_predictor_forward.3} parent=0 // pred_check
    _
  $region19: #{sage_link_predictor_forward.3} parent=0 // pred_check_branch
    %20 = sbr.rel (0) target = $region21
  $region20: #{sage_link_predictor_forward.3} parent=0 // pred_region
    _
  $region21: #{sage_link_predictor_forward.3} parent=0 // pred_fallthru
    _
  // Predicated region
  $region22: #{sage_link_predictor_forward.3} parent=0 // pred_check
    _
  $region23: #{sage_link_predictor_forward.3} parent=0 // pred_check_branch
    %22 = sbr.rel (0) target = $region25
  $region24: #{sage_link_predictor_forward.3} parent=0 // pred_region
    _
  $region25: #{sage_link_predictor_forward.3} parent=0 // pred_fallthru
    _
  %p24 = scmp.eq.s32.totalorder 0, 0
  // Predicated region
  $region26: #{sage_link_predictor_forward.3} parent=0 // pred_check
    %p25 = pneg %p24
  $region27: #{sage_link_predictor_forward.3} parent=0 // pred_check_branch
    %27 = sbr.rel (%p25) target = $region29
  $region28: #{sage_link_predictor_forward.3} parent=0 // pred_region
    %28 = vst [vmem:[#allocation2] sm:$0xff] 0.0
    %29 = vst [vmem:[#allocation2 + $0x8] sm:$0xff] 0.0
    %30 = vst [vmem:[#allocation2 + $0x10] sm:$0xff] 0.0
    %31 = vst [vmem:[#allocation2 + $0x18] sm:$0xff] 0.0
    %32 = vst [vmem:[#allocation2 + $0x20] sm:$0xff] 0.0
    %33 = vst [vmem:[#allocation2 + $0x28] sm:$0xff] 0.0
    %34 = vst [vmem:[#allocation2 + $0x30] sm:$0xff] 0.0
    %35 = vst [vmem:[#allocation2 + $0x38] sm:$0xff] 0.0
    %36 = vst [vmem:[#allocation2 + $0x40] sm:$0xff] 0.0
    %37 = vst [vmem:[#allocation2 + $0x48] sm:$0xff] 0.0
    %38 = vst [vmem:[#allocation2 + $0x50] sm:$0xff] 0.0
    %39 = vst [vmem:[#allocation2 + $0x58] sm:$0xff] 0.0
    %40 = vst [vmem:[#allocation2 + $0x60] sm:$0xff] 0.0
    %41 = vst [vmem:[#allocation2 + $0x68] sm:$0xff] 0.0
    %42 = vst [vmem:[#allocation2 + $0x70] sm:$0xff] 0.0
    %43 = vst [vmem:[#allocation2 + $0x78] sm:$0xff] 0.0
  $region29: #{sage_link_predictor_forward.3} parent=0 // pred_fallthru
    _
  %v44 = vld [vmem:[#allocation2] sm:$0xff]
  %v45 = vld [vmem:[#allocation2 + $0x8] sm:$0xff]
  %v46 = vld [vmem:[#allocation2 + $0x10] sm:$0xff]
  %v47 = vld [vmem:[#allocation2 + $0x18] sm:$0xff]
  %v48 = vld [vmem:[#allocation2 + $0x20] sm:$0xff]
  %v49 = vld [vmem:[#allocation2 + $0x28] sm:$0xff]
  %v50 = vld [vmem:[#allocation2 + $0x30] sm:$0xff]
  %v51 = vld [vmem:[#allocation2 + $0x38] sm:$0xff]
  %v52 = vld [vmem:[#allocation2 + $0x40] sm:$0xff]
  %v53 = vld [vmem:[#allocation2 + $0x48] sm:$0xff]
  %v54 = vld [vmem:[#allocation2 + $0x50] sm:$0xff]
  %v55 = vld [vmem:[#allocation2 + $0x58] sm:$0xff]
  %v56 = vld [vmem:[#allocation2 + $0x60] sm:$0xff]
  %v57 = vld [vmem:[#allocation2 + $0x68] sm:$0xff]
  %v58 = vld [vmem:[#allocation2 + $0x70] sm:$0xff]
  %v59 = vld [vmem:[#allocation2 + $0x78] sm:$0xff]
  %v60 = vld [vmem:[%s0] sm:$0xf]
  %v61 = vld [vmem:[%s0 + $0x4] sm:$0xf]
  %v62 = vld [vmem:[%s0 + $0x8] sm:$0xf]
  %v63 = vld [vmem:[%s0 + $0xc] sm:$0xf]
  %v64 = vld [vmem:[%s0 + $0x10] sm:$0xf]
  %v65 = vld [vmem:[%s0 + $0x14] sm:$0xf]
  %v66 = vld [vmem:[%s0 + $0x18] sm:$0xf]
  %v67 = vld [vmem:[%s0 + $0x1c] sm:$0xf]
  %v68 = vld [vmem:[%s0 + $0x20] sm:$0xf]
  %v69 = vld [vmem:[%s0 + $0x24] sm:$0xf]
  %v70 = vld [vmem:[%s0 + $0x28] sm:$0xf]
  %v71 = vld [vmem:[%s0 + $0x2c] sm:$0xf]
  %v72 = vld [vmem:[%s0 + $0x30] sm:$0xf]
  %v73 = vld [vmem:[%s0 + $0x34] sm:$0xf]
  %v74 = vld [vmem:[%s0 + $0x38] sm:$0xf]
  %v75 = vld [vmem:[%s0 + $0x3c] sm:$0xf]
  %v76 = vld [vmem:[%s1] sm:$0xf]
  %v77 = vld [vmem:[%s1 + $0x4] sm:$0xf]
  %v78 = vld [vmem:[%s1 + $0x8] sm:$0xf]
  %v79 = vld [vmem:[%s1 + $0xc] sm:$0xf]
  %v80 = vld [vmem:[%s1 + $0x10] sm:$0xf]
  %v81 = vld [vmem:[%s1 + $0x14] sm:$0xf]
  %v82 = vld [vmem:[%s1 + $0x18] sm:$0xf]
  %v83 = vld [vmem:[%s1 + $0x1c] sm:$0xf]
  %v84 = vld [vmem:[%s1 + $0x20] sm:$0xf]
  %v85 = vld [vmem:[%s1 + $0x24] sm:$0xf]
  %v86 = vld [vmem:[%s1 + $0x28] sm:$0xf]
  %v87 = vld [vmem:[%s1 + $0x2c] sm:$0xf]
  %v88 = vld [vmem:[%s1 + $0x30] sm:$0xf]
  %v89 = vld [vmem:[%s1 + $0x34] sm:$0xf]
  %v90 = vld [vmem:[%s1 + $0x38] sm:$0xf]
  %v91 = vld [vmem:[%s1 + $0x3c] sm:$0xf]
  %v108 = vunpack.c.l.b16 %v60
  %v109 = vunpack.c.l.b16 %v61
  %v110 = vunpack.c.l.b16 %v62
  %v111 = vunpack.c.l.b16 %v63
  %v112 = vunpack.c.l.b16 %v64
  %v113 = vunpack.c.l.b16 %v65
  %v114 = vunpack.c.l.b16 %v66
  %v115 = vunpack.c.l.b16 %v67
  %v116 = vunpack.c.l.b16 %v68
  %v117 = vunpack.c.l.b16 %v69
  %v118 = vunpack.c.l.b16 %v70
  %v119 = vunpack.c.l.b16 %v71
  %v120 = vunpack.c.l.b16 %v72
  %v121 = vunpack.c.l.b16 %v73
  %v122 = vunpack.c.l.b16 %v74
  %v123 = vunpack.c.l.b16 %v75
  %v124 = vpack.c.b16 %v109, %v108
  %v125 = vpack.c.b16 %v111, %v110
  %v126 = vpack.c.b16 %v113, %v112
  %v127 = vpack.c.b16 %v115, %v114
  %v128 = vpack.c.b16 %v117, %v116
  %v129 = vpack.c.b16 %v119, %v118
  %v130 = vpack.c.b16 %v121, %v120
  %v131 = vpack.c.b16 %v123, %v122
  %v156 = vunpack.c.l.b16 %v76
  %v157 = vunpack.c.l.b16 %v77
  %v158 = vunpack.c.l.b16 %v78
  %v159 = vunpack.c.l.b16 %v79
  %v160 = vunpack.c.l.b16 %v80
  %v161 = vunpack.c.l.b16 %v81
  %v162 = vunpack.c.l.b16 %v82
  %v163 = vunpack.c.l.b16 %v83
  %v164 = vunpack.c.l.b16 %v84
  %v165 = vunpack.c.l.b16 %v85
  %v166 = vunpack.c.l.b16 %v86
  %v167 = vunpack.c.l.b16 %v87
  %v168 = vunpack.c.l.b16 %v88
  %v169 = vunpack.c.l.b16 %v89
  %v170 = vunpack.c.l.b16 %v90
  %v171 = vunpack.c.l.b16 %v91
  %v172 = vpack.c.b16 %v157, %v156
  %v173 = vpack.c.b16 %v159, %v158
  %v174 = vpack.c.b16 %v161, %v160
  %v175 = vpack.c.b16 %v163, %v162
  %v176 = vpack.c.b16 %v165, %v164
  %v177 = vpack.c.b16 %v167, %v166
  %v178 = vpack.c.b16 %v169, %v168
  %v179 = vpack.c.b16 %v171, %v170
  %188 = vmatprep.subr.bf16.mxu0 0
  %189 = vmatpush1.bf16.msra.mxu0 %v172
  %190 = vmatprep.subr.bf16.mxu0 0
  %191 = vmatpush1.bf16.msra.mxu0 %v173
  %192 = vmatprep.subr.bf16.mxu0 0
  %193 = vmatpush1.bf16.msra.mxu0 %v174
  %194 = vmatprep.subr.bf16.mxu0 0
  %195 = vmatpush1.bf16.msra.mxu0 %v175
  %196 = vmatprep.subr.bf16.mxu0 0
  %197 = vmatpush1.bf16.msra.mxu0 %v176
  %198 = vmatprep.subr.bf16.mxu0 0
  %199 = vmatpush1.bf16.msra.mxu0 %v177
  %200 = vmatprep.subr.bf16.mxu0 0
  %201 = vmatpush1.bf16.msra.mxu0 %v178
  %202 = vmatprep.subr.bf16.mxu0 0
  %203 = vmatpush1.bf16.msra.mxu0 %v179
  %204 = vmatprep.subr.bf16.mxu0 0
  %205 = vmatpush1.bf16.msra.mxu0 0
  %206 = vmatprep.subr.bf16.mxu0 0
  %207 = vmatpush1.bf16.msra.mxu0 0
  %208 = vmatprep.subr.bf16.mxu0 0
  %209 = vmatpush1.bf16.msra.mxu0 0
  %210 = vmatprep.subr.bf16.mxu0 0
  %211 = vmatpush1.bf16.msra.mxu0 0
  %212 = vmatprep.subr.bf16.mxu0 0
  %213 = vmatpush1.bf16.msra.mxu0 0
  %214 = vmatprep.subr.bf16.mxu0 0
  %215 = vmatpush1.bf16.msra.mxu0 0
  %216 = vmatprep.subr.bf16.mxu0 0
  %217 = vmatpush1.bf16.msra.mxu0 0
  %218 = vmatprep.subr.bf16.mxu0 0
  %219 = vmatpush1.bf16.msra.mxu0 0
  %220 = vmatprep.mubr.bf16.mxu0 0
  %221 = vmatmul.mubr.bf16.gmra.mrb[0].mxu0 %v124
  %v222 = vpop.f32.mrb[0].mxu0
  %v223 = vadd.f32 0.0, %v222
  %v224 = vpop.f32.mrb[0].mxu0
  %v225 = vpop.f32.mrb[0].mxu0
  %v226 = vadd.f32 0.0, %v225
  %v227 = vpop.f32.mrb[0].mxu0
  %228 = vmatprep.mubr.bf16.mxu0 0
  %229 = vmatmul.mubr.bf16.gmra.mrb[0].mxu0 %v125
  %v230 = vpop.f32.mrb[0].mxu0
  %v231 = vadd.f32 0.0, %v230
  %v232 = vpop.f32.mrb[0].mxu0
  %v233 = vpop.f32.mrb[0].mxu0
  %v234 = vadd.f32 0.0, %v233
  %v235 = vpop.f32.mrb[0].mxu0
  %236 = vmatprep.mubr.bf16.mxu0 0
  %237 = vmatmul.mubr.bf16.gmra.mrb[0].mxu0 %v126
  %v238 = vpop.f32.mrb[0].mxu0
  %v239 = vadd.f32 0.0, %v238
  %v240 = vpop.f32.mrb[0].mxu0
  %v241 = vpop.f32.mrb[0].mxu0
  %v242 = vadd.f32 0.0, %v241
  %v243 = vpop.f32.mrb[0].mxu0
  %244 = vmatprep.mubr.bf16.mxu0 0
  %245 = vmatmul.mubr.bf16.gmra.mrb[0].mxu0 %v127
  %v246 = vpop.f32.mrb[0].mxu0
  %v247 = vadd.f32 0.0, %v246
  %v248 = vpop.f32.mrb[0].mxu0
  %v249 = vpop.f32.mrb[0].mxu0
  %v250 = vadd.f32 0.0, %v249
  %v251 = vpop.f32.mrb[0].mxu0
  %252 = vmatprep.mubr.bf16.mxu0 0
  %253 = vmatmul.mubr.bf16.gmra.mrb[0].mxu0 %v128
  %v254 = vpop.f32.mrb[0].mxu0
  %v255 = vadd.f32 0.0, %v254
  %v256 = vpop.f32.mrb[0].mxu0
  %v257 = vpop.f32.mrb[0].mxu0
  %v258 = vadd.f32 0.0, %v257
  %v259 = vpop.f32.mrb[0].mxu0
  %260 = vmatprep.mubr.bf16.mxu0 0
  %261 = vmatmul.mubr.bf16.gmra.mrb[0].mxu0 %v129
  %v262 = vpop.f32.mrb[0].mxu0
  %v263 = vadd.f32 0.0, %v262
  %v264 = vpop.f32.mrb[0].mxu0
  %v265 = vpop.f32.mrb[0].mxu0
  %v266 = vadd.f32 0.0, %v265
  %v267 = vpop.f32.mrb[0].mxu0
  %268 = vmatprep.mubr.bf16.mxu0 0
  %269 = vmatmul.mubr.bf16.gmra.mrb[0].mxu0 %v130
  %v270 = vpop.f32.mrb[0].mxu0
  %v271 = vadd.f32 0.0, %v270
  %v272 = vpop.f32.mrb[0].mxu0
  %v273 = vpop.f32.mrb[0].mxu0
  %v274 = vadd.f32 0.0, %v273
  %v275 = vpop.f32.mrb[0].mxu0
  %276 = vmatprep.mubr.bf16.mxu0 0
  %277 = vmatmul.mubr.bf16.gmra.mrb[0].mxu0 %v131
  %v278 = vpop.f32.mrb[0].mxu0
  %v279 = vadd.f32 0.0, %v278
  %v280 = vpop.f32.mrb[0].mxu0
  %v281 = vpop.f32.mrb[0].mxu0
  %v282 = vadd.f32 0.0, %v281
  %v283 = vpop.f32.mrb[0].mxu0
  %284 = vdwg.mxu0
  %v285 = vadd.f32 %v44, %v223
  %v286 = vadd.f32 %v45, %v226
  %v287 = vadd.f32 %v46, %v231
  %v288 = vadd.f32 %v47, %v234
  %v289 = vadd.f32 %v48, %v239
  %v290 = vadd.f32 %v49, %v242
  %v291 = vadd.f32 %v50, %v247
  %v292 = vadd.f32 %v51, %v250
  %v293 = vadd.f32 %v52, %v255
  %v294 = vadd.f32 %v53, %v258
  %v295 = vadd.f32 %v54, %v263
  %v296 = vadd.f32 %v55, %v266
  %v297 = vadd.f32 %v56, %v271
  %v298 = vadd.f32 %v57, %v274
  %v299 = vadd.f32 %v58, %v279
  %v300 = vadd.f32 %v59, %v282
  %301 = vst [vmem:[#allocation2] sm:$0xff] %v285
  %302 = vst [vmem:[#allocation2 + $0x8] sm:$0xff] %v286
  %303 = vst [vmem:[#allocation2 + $0x10] sm:$0xff] %v287
  %304 = vst [vmem:[#allocation2 + $0x18] sm:$0xff] %v288
  %305 = vst [vmem:[#allocation2 + $0x20] sm:$0xff] %v289
  %306 = vst [vmem:[#allocation2 + $0x28] sm:$0xff] %v290
  %307 = vst [vmem:[#allocation2 + $0x30] sm:$0xff] %v291
  %308 = vst [vmem:[#allocation2 + $0x38] sm:$0xff] %v292
  %309 = vst [vmem:[#allocation2 + $0x40] sm:$0xff] %v293
  %310 = vst [vmem:[#allocation2 + $0x48] sm:$0xff] %v294
  %311 = vst [vmem:[#allocation2 + $0x50] sm:$0xff] %v295
  %312 = vst [vmem:[#allocation2 + $0x58] sm:$0xff] %v296
  %313 = vst [vmem:[#allocation2 + $0x60] sm:$0xff] %v297
  %314 = vst [vmem:[#allocation2 + $0x68] sm:$0xff] %v298
  %315 = vst [vmem:[#allocation2 + $0x70] sm:$0xff] %v299
  %316 = vst [vmem:[#allocation2 + $0x78] sm:$0xff] %v300
  // Predicated region
  $region30: #{sage_link_predictor_forward.3} parent=0 // pred_check
    %p317 = pneg %p24
  $region31: #{sage_link_predictor_forward.3} parent=0 // pred_check_branch
    %319 = sbr.rel (%p317) target = $region33
  $region32: #{sage_link_predictor_forward.3} parent=0 // pred_region
    %v320 = vld [vmem:[#allocation2] sm:$0xff]
    %v321 = vld [vmem:[#allocation2 + $0x8] sm:$0xff]
    %v322 = vld [vmem:[#allocation2 + $0x10] sm:$0xff]
    %v323 = vld [vmem:[#allocation2 + $0x18] sm:$0xff]
    %v324 = vld [vmem:[#allocation2 + $0x20] sm:$0xff]
    %v325 = vld [vmem:[#allocation2 + $0x28] sm:$0xff]
    %v326 = vld [vmem:[#allocation2 + $0x30] sm:$0xff]
    %v327 = vld [vmem:[#allocation2 + $0x38] sm:$0xff]
    %v328 = vld [vmem:[#allocation2 + $0x40] sm:$0xff]
    %v329 = vld [vmem:[#allocation2 + $0x48] sm:$0xff]
    %v330 = vld [vmem:[#allocation2 + $0x50] sm:$0xff]
    %v331 = vld [vmem:[#allocation2 + $0x58] sm:$0xff]
    %v332 = vld [vmem:[#allocation2 + $0x60] sm:$0xff]
    %v333 = vld [vmem:[#allocation2 + $0x68] sm:$0xff]
    %v334 = vld [vmem:[#allocation2 + $0x70] sm:$0xff]
    %v335 = vld [vmem:[#allocation2 + $0x78] sm:$0xff]
    %v336 = vld [vmem:[%s5] sm:$0xff]
    %v337 = vld [vmem:[%s5 + $0x8] sm:$0xff]
    %v338 = vld [vmem:[%s5 + $0x10] sm:$0xff]
    %v339 = vld [vmem:[%s5 + $0x18] sm:$0xff]
    %v340 = vld [vmem:[%s5 + $0x20] sm:$0xff]
    %v341 = vld [vmem:[%s5 + $0x28] sm:$0xff]
    %v342 = vld [vmem:[%s5 + $0x30] sm:$0xff]
    %v343 = vld [vmem:[%s5 + $0x38] sm:$0xff]
    %v344 = vld [vmem:[%s5 + $0x40] sm:$0xff]
    %v345 = vld [vmem:[%s5 + $0x48] sm:$0xff]
    %v346 = vld [vmem:[%s5 + $0x50] sm:$0xff]
    %v347 = vld [vmem:[%s5 + $0x58] sm:$0xff]
    %v348 = vld [vmem:[%s5 + $0x60] sm:$0xff]
    %v349 = vld [vmem:[%s5 + $0x68] sm:$0xff]
    %v350 = vld [vmem:[%s5 + $0x70] sm:$0xff]
    %v351 = vld [vmem:[%s5 + $0x78] sm:$0xff]
    %353 = vset.pattern.permute.xlu0 0
    %354 = vperm.xlu0 %353, %v336
    %v355 = vpop.permute.xlu0 %354
    %358 = vset.pattern.permute.xlu0 0
    %359 = vperm.xlu0 %358, %v337
    %v360 = vpop.permute.xlu0 %359
    %363 = vset.pattern.permute.xlu0 0
    %364 = vperm.xlu0 %363, %v338
    %v365 = vpop.permute.xlu0 %364
    %368 = vset.pattern.permute.xlu0 0
    %369 = vperm.xlu0 %368, %v339
    %v370 = vpop.permute.xlu0 %369
    %373 = vset.pattern.permute.xlu0 0
    %374 = vperm.xlu0 %373, %v340
    %v375 = vpop.permute.xlu0 %374
    %378 = vset.pattern.permute.xlu0 0
    %379 = vperm.xlu0 %378, %v341
    %v380 = vpop.permute.xlu0 %379
    %383 = vset.pattern.permute.xlu0 0
    %384 = vperm.xlu0 %383, %v342
    %v385 = vpop.permute.xlu0 %384
    %388 = vset.pattern.permute.xlu0 0
    %389 = vperm.xlu0 %388, %v343
    %v390 = vpop.permute.xlu0 %389
    %393 = vset.pattern.permute.xlu0 0
    %394 = vperm.xlu0 %393, %v344
    %v395 = vpop.permute.xlu0 %394
    %398 = vset.pattern.permute.xlu0 0
    %399 = vperm.xlu0 %398, %v345
    %v400 = vpop.permute.xlu0 %399
    %403 = vset.pattern.permute.xlu0 0
    %404 = vperm.xlu0 %403, %v346
    %v405 = vpop.permute.xlu0 %404
    %408 = vset.pattern.permute.xlu0 0
    %409 = vperm.xlu0 %408, %v347
    %v410 = vpop.permute.xlu0 %409
    %413 = vset.pattern.permute.xlu0 0
    %414 = vperm.xlu0 %413, %v348
    %v415 = vpop.permute.xlu0 %414
    %418 = vset.pattern.permute.xlu0 0
    %419 = vperm.xlu0 %418, %v349
    %v420 = vpop.permute.xlu0 %419
    %423 = vset.pattern.permute.xlu0 0
    %424 = vperm.xlu0 %423, %v350
    %v425 = vpop.permute.xlu0 %424
    %428 = vset.pattern.permute.xlu0 0
    %429 = vperm.xlu0 %428, %v351
    %v430 = vpop.permute.xlu0 %429
    %v432 = vmul.f32 %v320, %v355
    %v433 = vmul.f32 %v321, %v360
    %v434 = vmul.f32 %v322, %v365
    %v435 = vmul.f32 %v323, %v370
    %v436 = vmul.f32 %v324, %v375
    %v437 = vmul.f32 %v325, %v380
    %v438 = vmul.f32 %v326, %v385
    %v439 = vmul.f32 %v327, %v390
    %v440 = vmul.f32 %v328, %v395
    %v441 = vmul.f32 %v329, %v400
    %v442 = vmul.f32 %v330, %v405
    %v443 = vmul.f32 %v331, %v410
    %v444 = vmul.f32 %v332, %v415
    %v445 = vmul.f32 %v333, %v420
    %v446 = vmul.f32 %v334, %v425
    %v447 = vmul.f32 %v335, %v430
    %v448 = vpack.c.bf16 %v433, %v432
    %v449 = vpack.c.bf16 %v435, %v434
    %v450 = vpack.c.bf16 %v437, %v436
    %v451 = vpack.c.bf16 %v439, %v438
    %v452 = vpack.c.bf16 %v441, %v440
    %v453 = vpack.c.bf16 %v443, %v442
    %v454 = vpack.c.bf16 %v445, %v444
    %v455 = vpack.c.bf16 %v447, %v446
    %v456 = vld [vmem:[%s2] sm:$0xf]
    %v457 = vld [vmem:[%s2 + $0x4] sm:$0xf]
    %v458 = vld [vmem:[%s2 + $0x8] sm:$0xf]
    %v459 = vld [vmem:[%s2 + $0xc] sm:$0xf]
    %v460 = vld [vmem:[%s2 + $0x10] sm:$0xf]
    %v461 = vld [vmem:[%s2 + $0x14] sm:$0xf]
    %v462 = vld [vmem:[%s2 + $0x18] sm:$0xf]
    %v463 = vld [vmem:[%s2 + $0x1c] sm:$0xf]
    %v464 = vld [vmem:[%s2 + $0x20] sm:$0xf]
    %v465 = vld [vmem:[%s2 + $0x24] sm:$0xf]
    %v466 = vld [vmem:[%s2 + $0x28] sm:$0xf]
    %v467 = vld [vmem:[%s2 + $0x2c] sm:$0xf]
    %v468 = vld [vmem:[%s2 + $0x30] sm:$0xf]
    %v469 = vld [vmem:[%s2 + $0x34] sm:$0xf]
    %v470 = vld [vmem:[%s2 + $0x38] sm:$0xf]
    %v471 = vld [vmem:[%s2 + $0x3c] sm:$0xf]
    %v488 = vunpack.c.l.b16 %v456
    %v489 = vunpack.c.l.b16 %v457
    %v490 = vunpack.c.l.b16 %v458
    %v491 = vunpack.c.l.b16 %v459
    %v492 = vunpack.c.l.b16 %v460
    %v493 = vunpack.c.l.b16 %v461
    %v494 = vunpack.c.l.b16 %v462
    %v495 = vunpack.c.l.b16 %v463
    %v496 = vunpack.c.l.b16 %v464
    %v497 = vunpack.c.l.b16 %v465
    %v498 = vunpack.c.l.b16 %v466
    %v499 = vunpack.c.l.b16 %v467
    %v500 = vunpack.c.l.b16 %v468
    %v501 = vunpack.c.l.b16 %v469
    %v502 = vunpack.c.l.b16 %v470
    %v503 = vunpack.c.l.b16 %v471
    %v504 = vpack.c.b16 %v489, %v488
    %v505 = vpack.c.b16 %v491, %v490
    %v506 = vpack.c.b16 %v493, %v492
    %v507 = vpack.c.b16 %v495, %v494
    %v508 = vpack.c.b16 %v497, %v496
    %v509 = vpack.c.b16 %v499, %v498
    %v510 = vpack.c.b16 %v501, %v500
    %v511 = vpack.c.b16 %v503, %v502
    %v520 = vld [vmem:[%s3] sm:$0xf]
    %v521 = vld [vmem:[%s3 + $0x4] sm:$0xf]
    %v522 = vld [vmem:[%s3 + $0x8] sm:$0xf]
    %v523 = vld [vmem:[%s3 + $0xc] sm:$0xf]
    %v524 = vld [vmem:[%s3 + $0x10] sm:$0xf]
    %v525 = vld [vmem:[%s3 + $0x14] sm:$0xf]
    %v526 = vld [vmem:[%s3 + $0x18] sm:$0xf]
    %v527 = vld [vmem:[%s3 + $0x1c] sm:$0xf]
    %v528 = vld [vmem:[%s3 + $0x20] sm:$0xf]
    %v529 = vld [vmem:[%s3 + $0x24] sm:$0xf]
    %v530 = vld [vmem:[%s3 + $0x28] sm:$0xf]
    %v531 = vld [vmem:[%s3 + $0x2c] sm:$0xf]
    %v532 = vld [vmem:[%s3 + $0x30] sm:$0xf]
    %v533 = vld [vmem:[%s3 + $0x34] sm:$0xf]
    %v534 = vld [vmem:[%s3 + $0x38] sm:$0xf]
    %v535 = vld [vmem:[%s3 + $0x3c] sm:$0xf]
    %v536 = vld [vmem:[%s3 + $0x40] sm:$0xf]
    %v537 = vld [vmem:[%s3 + $0x44] sm:$0xf]
    %v538 = vld [vmem:[%s3 + $0x48] sm:$0xf]
    %v539 = vld [vmem:[%s3 + $0x4c] sm:$0xf]
    %v540 = vld [vmem:[%s3 + $0x50] sm:$0xf]
    %v541 = vld [vmem:[%s3 + $0x54] sm:$0xf]
    %v542 = vld [vmem:[%s3 + $0x58] sm:$0xf]
    %v543 = vld [vmem:[%s3 + $0x5c] sm:$0xf]
    %v544 = vld [vmem:[%s3 + $0x60] sm:$0xf]
    %v545 = vld [vmem:[%s3 + $0x64] sm:$0xf]
    %v546 = vld [vmem:[%s3 + $0x68] sm:$0xf]
    %v547 = vld [vmem:[%s3 + $0x6c] sm:$0xf]
    %v548 = vld [vmem:[%s3 + $0x70] sm:$0xf]
    %v549 = vld [vmem:[%s3 + $0x74] sm:$0xf]
    %v550 = vld [vmem:[%s3 + $0x78] sm:$0xf]
    %v551 = vld [vmem:[%s3 + $0x7c] sm:$0xf]
    %v552 = vld [vmem:[%s4] sm:$0x1]
    %v554 = vlaneseq
    %v555 = vshrl.u32 %v554, 7
    %v556 = vsub.s32 0, %v555
    %v557 = vrot.slane %v552, %v556
    %v591 = vunpack.c.l.b16 %v520
    %v592 = vunpack.c.l.b16 %v521
    %v593 = vunpack.c.l.b16 %v522
    %v594 = vunpack.c.l.b16 %v523
    %v595 = vunpack.c.l.b16 %v524
    %v596 = vunpack.c.l.b16 %v525
    %v597 = vunpack.c.l.b16 %v526
    %v598 = vunpack.c.l.b16 %v527
    %v599 = vunpack.c.l.b16 %v528
    %v600 = vunpack.c.l.b16 %v529
    %v601 = vunpack.c.l.b16 %v530
    %v602 = vunpack.c.l.b16 %v531
    %v603 = vunpack.c.l.b16 %v532
    %v604 = vunpack.c.l.b16 %v533
    %v605 = vunpack.c.l.b16 %v534
    %v606 = vunpack.c.l.b16 %v535
    %v607 = vunpack.c.l.b16 %v536
    %v608 = vunpack.c.l.b16 %v537
    %v609 = vunpack.c.l.b16 %v538
    %v610 = vunpack.c.l.b16 %v539
    %v611 = vunpack.c.l.b16 %v540
    %v612 = vunpack.c.l.b16 %v541
    %v613 = vunpack.c.l.b16 %v542
    %v614 = vunpack.c.l.b16 %v543
    %v615 = vunpack.c.l.b16 %v544
    %v616 = vunpack.c.l.b16 %v545
    %v617 = vunpack.c.l.b16 %v546
    %v618 = vunpack.c.l.b16 %v547
    %v619 = vunpack.c.l.b16 %v548
    %v620 = vunpack.c.l.b16 %v549
    %v621 = vunpack.c.l.b16 %v550
    %v622 = vunpack.c.l.b16 %v551
    %v623 = vpack.c.b16 %v592, %v591
    %v624 = vpack.c.b16 %v594, %v593
    %v625 = vpack.c.b16 %v596, %v595
    %v626 = vpack.c.b16 %v598, %v597
    %v627 = vpack.c.b16 %v600, %v599
    %v628 = vpack.c.b16 %v602, %v601
    %v629 = vpack.c.b16 %v604, %v603
    %v630 = vpack.c.b16 %v606, %v605
    %v631 = vpack.c.b16 %v608, %v607
    %v632 = vpack.c.b16 %v610, %v609
    %v633 = vpack.c.b16 %v612, %v611
    %v634 = vpack.c.b16 %v614, %v613
    %v635 = vpack.c.b16 %v616, %v615
    %v636 = vpack.c.b16 %v618, %v617
    %v637 = vpack.c.b16 %v620, %v619
    %v638 = vpack.c.b16 %v622, %v621
    %655 = vmatprep.subr.bf16.mxu0 0
    %656 = vmatpush1.bf16.msra.mxu0 %v623
    %657 = vmatprep.subr.bf16.mxu0 0
    %658 = vmatpush1.bf16.msra.mxu0 %v624
    %659 = vmatprep.subr.bf16.mxu0 0
    %660 = vmatpush1.bf16.msra.mxu0 %v625
    %661 = vmatprep.subr.bf16.mxu0 0
    %662 = vmatpush1.bf16.msra.mxu0 %v626
    %663 = vmatprep.subr.bf16.mxu0 0
    %664 = vmatpush1.bf16.msra.mxu0 %v627
    %665 = vmatprep.subr.bf16.mxu0 0
    %666 = vmatpush1.bf16.msra.mxu0 %v628
    %667 = vmatprep.subr.bf16.mxu0 0
    %668 = vmatpush1.bf16.msra.mxu0 %v629
    %669 = vmatprep.subr.bf16.mxu0 0
    %670 = vmatpush1.bf16.msra.mxu0 %v630
    %671 = vmatprep.subr.bf16.mxu0 0
    %672 = vmatpush1.bf16.msra.mxu0 %v631
    %673 = vmatprep.subr.bf16.mxu0 0
    %674 = vmatpush1.bf16.msra.mxu0 %v632
    %675 = vmatprep.subr.bf16.mxu0 0
    %676 = vmatpush1.bf16.msra.mxu0 %v633
    %677 = vmatprep.subr.bf16.mxu0 0
    %678 = vmatpush1.bf16.msra.mxu0 %v634
    %679 = vmatprep.subr.bf16.mxu0 0
    %680 = vmatpush1.bf16.msra.mxu0 %v635
    %681 = vmatprep.subr.bf16.mxu0 0
    %682 = vmatpush1.bf16.msra.mxu0 %v636
    %683 = vmatprep.subr.bf16.mxu0 0
    %684 = vmatpush1.bf16.msra.mxu0 %v637
    %685 = vmatprep.subr.bf16.mxu0 0
    %686 = vmatpush1.bf16.msra.mxu0 %v638
    %687 = vmatprep.mubr.bf16.mxu0 %v504
    %688 = vmatmul.mubr.bf16.gmra.mrb[0].mxu0 %v448
    %v689 = vpop.f32.mrb[0].mxu0
    %v690 = vadd.f32 %v557, %v689
    %v691 = vpop.f32.mrb[0].mxu0
    %v692 = vpop.f32.mrb[0].mxu0
    %v693 = vadd.f32 %v557, %v692
    %v694 = vpop.f32.mrb[0].mxu0
    %695 = vmatprep.mubr.bf16.mxu0 %v505
    %696 = vmatmul.mubr.bf16.gmra.mrb[0].mxu0 %v449
    %v697 = vpop.f32.mrb[0].mxu0
    %v698 = vadd.f32 %v557, %v697
    %v699 = vpop.f32.mrb[0].mxu0
    %v700 = vpop.f32.mrb[0].mxu0
    %v701 = vadd.f32 %v557, %v700
    %v702 = vpop.f32.mrb[0].mxu0
    %703 = vmatprep.mubr.bf16.mxu0 %v506
    %704 = vmatmul.mubr.bf16.gmra.mrb[0].mxu0 %v450
    %v705 = vpop.f32.mrb[0].mxu0
    %v706 = vadd.f32 %v557, %v705
    %v707 = vpop.f32.mrb[0].mxu0
    %v708 = vpop.f32.mrb[0].mxu0
    %v709 = vadd.f32 %v557, %v708
    %v710 = vpop.f32.mrb[0].mxu0
    %711 = vmatprep.mubr.bf16.mxu0 %v507
    %712 = vmatmul.mubr.bf16.gmra.mrb[0].mxu0 %v451
    %v713 = vpop.f32.mrb[0].mxu0
    %v714 = vadd.f32 %v557, %v713
    %v715 = vpop.f32.mrb[0].mxu0
    %v716 = vpop.f32.mrb[0].mxu0
    %v717 = vadd.f32 %v557, %v716
    %v718 = vpop.f32.mrb[0].mxu0
    %719 = vmatprep.mubr.bf16.mxu0 %v508
    %720 = vmatmul.mubr.bf16.gmra.mrb[0].mxu0 %v452
    %v721 = vpop.f32.mrb[0].mxu0
    %v722 = vadd.f32 %v557, %v721
    %v723 = vpop.f32.mrb[0].mxu0
    %v724 = vpop.f32.mrb[0].mxu0
    %v725 = vadd.f32 %v557, %v724
    %v726 = vpop.f32.mrb[0].mxu0
    %727 = vmatprep.mubr.bf16.mxu0 %v509
    %728 = vmatmul.mubr.bf16.gmra.mrb[0].mxu0 %v453
    %v729 = vpop.f32.mrb[0].mxu0
    %v730 = vadd.f32 %v557, %v729
    %v731 = vpop.f32.mrb[0].mxu0
    %v732 = vpop.f32.mrb[0].mxu0
    %v733 = vadd.f32 %v557, %v732
    %v734 = vpop.f32.mrb[0].mxu0
    %735 = vmatprep.mubr.bf16.mxu0 %v510
    %736 = vmatmul.mubr.bf16.gmra.mrb[0].mxu0 %v454
    %v737 = vpop.f32.mrb[0].mxu0
    %v738 = vadd.f32 %v557, %v737
    %v739 = vpop.f32.mrb[0].mxu0
    %v740 = vpop.f32.mrb[0].mxu0
    %v741 = vadd.f32 %v557, %v740
    %v742 = vpop.f32.mrb[0].mxu0
    %743 = vmatprep.mubr.bf16.mxu0 %v511
    %744 = vmatmul.mubr.bf16.gmra.mrb[0].mxu0 %v455
    %v745 = vpop.f32.mrb[0].mxu0
    %v746 = vadd.f32 %v557, %v745
    %v747 = vpop.f32.mrb[0].mxu0
    %v748 = vpop.f32.mrb[0].mxu0
    %v749 = vadd.f32 %v557, %v748
    %v750 = vpop.f32.mrb[0].mxu0
    %751 = vdwg.mxu0
    %v752 = vmax.f32 %v690, 0.0
    %v753 = vmax.f32 %v693, 0.0
    %v754 = vmax.f32 %v698, 0.0
    %v755 = vmax.f32 %v701, 0.0
    %v756 = vmax.f32 %v706, 0.0
    %v757 = vmax.f32 %v709, 0.0
    %v758 = vmax.f32 %v714, 0.0
    %v759 = vmax.f32 %v717, 0.0
    %v760 = vmax.f32 %v722, 0.0
    %v761 = vmax.f32 %v725, 0.0
    %v762 = vmax.f32 %v730, 0.0
    %v763 = vmax.f32 %v733, 0.0
    %v764 = vmax.f32 %v738, 0.0
    %v765 = vmax.f32 %v741, 0.0
    %v766 = vmax.f32 %v746, 0.0
    %v767 = vmax.f32 %v749, 0.0
    %v768 = vpack.c.bf16 %v753, %v752
    %v769 = vpack.c.bf16 %v755, %v754
    %v770 = vpack.c.bf16 %v757, %v756
    %v771 = vpack.c.bf16 %v759, %v758
    %v772 = vpack.c.bf16 %v761, %v760
    %v773 = vpack.c.bf16 %v763, %v762
    %v774 = vpack.c.bf16 %v765, %v764
    %v775 = vpack.c.bf16 %v767, %v766
    %v784 = vunpack.c.l.b16 %v768
    %v785 = vunpack.c.h.b16 %v768
    %v786 = vunpack.c.l.b16 %v769
    %v787 = vunpack.c.h.b16 %v769
    %v788 = vunpack.c.l.b16 %v770
    %v789 = vunpack.c.h.b16 %v770
    %v790 = vunpack.c.l.b16 %v771
    %v791 = vunpack.c.h.b16 %v771
    %v792 = vunpack.c.l.b16 %v772
    %v793 = vunpack.c.h.b16 %v772
    %v794 = vunpack.c.l.b16 %v773
    %v795 = vunpack.c.h.b16 %v773
    %v796 = vunpack.c.l.b16 %v774
    %v797 = vunpack.c.h.b16 %v774
    %v798 = vunpack.c.l.b16 %v775
    %v799 = vunpack.c.h.b16 %v775
    %v800 = vpack.c.b16 %v784, %v784
    %v801 = vpack.c.b16 %v785, %v785
    %v802 = vpack.c.b16 %v786, %v786
    %v803 = vpack.c.b16 %v787, %v787
    %v804 = vpack.c.b16 %v788, %v788
    %v805 = vpack.c.b16 %v789, %v789
    %v806 = vpack.c.b16 %v790, %v790
    %v807 = vpack.c.b16 %v791, %v791
    %v808 = vpack.c.b16 %v792, %v792
    %v809 = vpack.c.b16 %v793, %v793
    %v810 = vpack.c.b16 %v794, %v794
    %v811 = vpack.c.b16 %v795, %v795
    %v812 = vpack.c.b16 %v796, %v796
    %v813 = vpack.c.b16 %v797, %v797
    %v814 = vpack.c.b16 %v798, %v798
    %v815 = vpack.c.b16 %v799, %v799
    %832 = vst [vmem:[%s6] sm:$0xf] %v800
    %833 = vst [vmem:[%s6 + $0x4] sm:$0xf] %v801
    %834 = vst [vmem:[%s6 + $0x8] sm:$0xf] %v802
    %835 = vst [vmem:[%s6 + $0xc] sm:$0xf] %v803
    %836 = vst [vmem:[%s6 + $0x10] sm:$0xf] %v804
    %837 = vst [vmem:[%s6 + $0x14] sm:$0xf] %v805
    %838 = vst [vmem:[%s6 + $0x18] sm:$0xf] %v806
    %839 = vst [vmem:[%s6 + $0x1c] sm:$0xf] %v807
    %840 = vst [vmem:[%s6 + $0x20] sm:$0xf] %v808
    %841 = vst [vmem:[%s6 + $0x24] sm:$0xf] %v809
    %842 = vst [vmem:[%s6 + $0x28] sm:$0xf] %v810
    %843 = vst [vmem:[%s6 + $0x2c] sm:$0xf] %v811
    %844 = vst [vmem:[%s6 + $0x30] sm:$0xf] %v812
    %845 = vst [vmem:[%s6 + $0x34] sm:$0xf] %v813
    %846 = vst [vmem:[%s6 + $0x38] sm:$0xf] %v814
    %847 = vst [vmem:[%s6 + $0x3c] sm:$0xf] %v815
  $region33: #{sage_link_predictor_forward.3} parent=0 // pred_fallthru
    _
  // Predicated region
  $region34: #{sage_link_predictor_forward.3} parent=0 // pred_check
    _
  $region35: #{sage_link_predictor_forward.3} parent=0 // pred_check_branch
    %849 = sbr.rel (0) target = $region37
  $region36: #{sage_link_predictor_forward.3} parent=0 // pred_region
    _
  $region37: #{sage_link_predictor_forward.3} parent=0 // pred_fallthru
    _
  // Predicated region
  $region38: #{sage_link_predictor_forward.3} parent=0 // pred_check
    _
  $region39: #{sage_link_predictor_forward.3} parent=0 // pred_check_branch
    %851 = sbr.rel (0) target = $region41
  $region40: #{sage_link_predictor_forward.3} parent=0 // pred_region
    _
  $region41: #{sage_link_predictor_forward.3} parent=0 // pred_fallthru
    _

// kernel: sage_link_predictor_forward.4
$region0: #{sage_link_predictor_forward.4}
  #allocation0 [shape = 'u32[]', space=smem, size = 0x4, offset = 0x4, fixed_abs, tag = 'smem constant byte address 0x4 - core index']
  #allocation1 [shape = 'u32[144,128]{1,0:T(1,128)}', space=vmem, size = 0x12000, scoped, tag = 'internal scratch']
  #allocation2 [shape = 'f32[128,128]{1,0:T(8,128)}', space=vmem, size = 0x10000, scoped, tag = 'scratch operand']
  %s0 = inlined_call_operand.vmem [shape: bf16[128,128], index: 0, kind: input, shape index: {}]
  %s1 = inlined_call_operand.vmem [shape: bf16[128,128], index: 1, kind: input, shape index: {}, may-alias: {1,2}]
  %s2 = inlined_call_operand.vmem [shape: bf16[128,128], index: 2, kind: input, shape index: {}, may-alias: {1,2}]
  %s3 = inlined_call_operand.vmem [shape: bf16[256,128], index: 3, kind: input, shape index: {}]
  %s4 = inlined_call_operand.vmem [shape: f32[1,128], index: 4, kind: input, shape index: {}]
  %s5 = inlined_call_operand.vmem [shape: f32[128,1], index: 5, kind: input, shape index: {}]
  %s6 = inlined_call_operand.vmem [shape: bf16[128,128], index: 6, kind: output, shape index: {}]
  %s7 = sld [smem:[#allocation0]]
  $region42: #{sage_link_predictor_forward.4} parent=0
    _
  %s9 = ssub.s32 1, %s7
  %s10 = scalar_select 0, %s9, %s7
  // Predicated region
  $region2: #{sage_link_predictor_forward.4} parent=0 // pred_check
    _
  $region3: #{sage_link_predictor_forward.4} parent=0 // pred_check_branch
    %12 = sbr.rel (0) target = $region5
  $region4: #{sage_link_predictor_forward.4} parent=0 // pred_region
    _
  $region5: #{sage_link_predictor_forward.4} parent=0 // pred_fallthru
    _
  // Predicated region
  $region6: #{sage_link_predictor_forward.4} parent=0 // pred_check
    _
  $region7: #{sage_link_predictor_forward.4} parent=0 // pred_check_branch
    %14 = sbr.rel (0) target = $region9
  $region8: #{sage_link_predictor_forward.4} parent=0 // pred_region
    _
  $region9: #{sage_link_predictor_forward.4} parent=0 // pred_fallthru
    _
  // Predicated region
  $region10: #{sage_link_predictor_forward.4} parent=0 // pred_check
    _
  $region11: #{sage_link_predictor_forward.4} parent=0 // pred_check_branch
    %16 = sbr.rel (0) target = $region13
  $region12: #{sage_link_predictor_forward.4} parent=0 // pred_region
    _
  $region13: #{sage_link_predictor_forward.4} parent=0 // pred_fallthru
    _
  // Predicated region
  $region14: #{sage_link_predictor_forward.4} parent=0 // pred_check
    _
  $region15: #{sage_link_predictor_forward.4} parent=0 // pred_check_branch
    %18 = sbr.rel (0) target = $region17
  $region16: #{sage_link_predictor_forward.4} parent=0 // pred_region
    _
  $region17: #{sage_link_predictor_forward.4} parent=0 // pred_fallthru
    _
  // Predicated region
  $region18: #{sage_link_predictor_forward.4} parent=0 // pred_check
    _
  $region19: #{sage_link_predictor_forward.4} parent=0 // pred_check_branch
    %20 = sbr.rel (0) target = $region21
  $region20: #{sage_link_predictor_forward.4} parent=0 // pred_region
    _
  $region21: #{sage_link_predictor_forward.4} parent=0 // pred_fallthru
    _
  // Predicated region
  $region22: #{sage_link_predictor_forward.4} parent=0 // pred_check
    _
  $region23: #{sage_link_predictor_forward.4} parent=0 // pred_check_branch
    %22 = sbr.rel (0) target = $region25
  $region24: #{sage_link_predictor_forward.4} parent=0 // pred_region
    _
  $region25: #{sage_link_predictor_forward.4} parent=0 // pred_fallthru
    _
  %p24 = scmp.eq.s32.totalorder 0, 0
  // Predicated region
  $region26: #{sage_link_predictor_forward.4} parent=0 // pred_check
    %p25 = pneg %p24
  $region27: #{sage_link_predictor_forward.4} parent=0 // pred_check_branch
    %27 = sbr.rel (%p25) target = $region29
  $region28: #{sage_link_predictor_forward.4} parent=0 // pred_region
    %28 = vst [vmem:[#allocation2] sm:$0xff] 0.0
    %29 = vst [vmem:[#allocation2 + $0x8] sm:$0xff] 0.0
    %30 = vst [vmem:[#allocation2 + $0x10] sm:$0xff] 0.0
    %31 = vst [vmem:[#allocation2 + $0x18] sm:$0xff] 0.0
    %32 = vst [vmem:[#allocation2 + $0x20] sm:$0xff] 0.0
    %33 = vst [vmem:[#allocation2 + $0x28] sm:$0xff] 0.0
    %34 = vst [vmem:[#allocation2 + $0x30] sm:$0xff] 0.0
    %35 = vst [vmem:[#allocation2 + $0x38] sm:$0xff] 0.0
    %36 = vst [vmem:[#allocation2 + $0x40] sm:$0xff] 0.0
    %37 = vst [vmem:[#allocation2 + $0x48] sm:$0xff] 0.0
    %38 = vst [vmem:[#allocation2 + $0x50] sm:$0xff] 0.0
    %39 = vst [vmem:[#allocation2 + $0x58] sm:$0xff] 0.0
    %40 = vst [vmem:[#allocation2 + $0x60] sm:$0xff] 0.0
    %41 = vst [vmem:[#allocation2 + $0x68] sm:$0xff] 0.0
    %42 = vst [vmem:[#allocation2 + $0x70] sm:$0xff] 0.0
    %43 = vst [vmem:[#allocation2 + $0x78] sm:$0xff] 0.0
  $region29: #{sage_link_predictor_forward.4} parent=0 // pred_fallthru
    _
  %v44 = vld [vmem:[#allocation2] sm:$0xff]
  %v45 = vld [vmem:[#allocation2 + $0x8] sm:$0xff]
  %v46 = vld [vmem:[#allocation2 + $0x10] sm:$0xff]
  %v47 = vld [vmem:[#allocation2 + $0x18] sm:$0xff]
  %v48 = vld [vmem:[#allocation2 + $0x20] sm:$0xff]
  %v49 = vld [vmem:[#allocation2 + $0x28] sm:$0xff]
  %v50 = vld [vmem:[#allocation2 + $0x30] sm:$0xff]
  %v51 = vld [vmem:[#allocation2 + $0x38] sm:$0xff]
  %v52 = vld [vmem:[#allocation2 + $0x40] sm:$0xff]
  %v53 = vld [vmem:[#allocation2 + $0x48] sm:$0xff]
  %v54 = vld [vmem:[#allocation2 + $0x50] sm:$0xff]
  %v55 = vld [vmem:[#allocation2 + $0x58] sm:$0xff]
  %v56 = vld [vmem:[#allocation2 + $0x60] sm:$0xff]
  %v57 = vld [vmem:[#allocation2 + $0x68] sm:$0xff]
  %v58 = vld [vmem:[#allocation2 + $0x70] sm:$0xff]
  %v59 = vld [vmem:[#allocation2 + $0x78] sm:$0xff]
  %v60 = vld [vmem:[%s0] sm:$0xf]
  %v61 = vld [vmem:[%s0 + $0x4] sm:$0xf]
  %v62 = vld [vmem:[%s0 + $0x8] sm:$0xf]
  %v63 = vld [vmem:[%s0 + $0xc] sm:$0xf]
  %v64 = vld [vmem:[%s0 + $0x10] sm:$0xf]
  %v65 = vld [vmem:[%s0 + $0x14] sm:$0xf]
  %v66 = vld [vmem:[%s0 + $0x18] sm:$0xf]
  %v67 = vld [vmem:[%s0 + $0x1c] sm:$0xf]
  %v68 = vld [vmem:[%s0 + $0x20] sm:$0xf]
  %v69 = vld [vmem:[%s0 + $0x24] sm:$0xf]
  %v70 = vld [vmem:[%s0 + $0x28] sm:$0xf]
  %v71 = vld [vmem:[%s0 + $0x2c] sm:$0xf]
  %v72 = vld [vmem:[%s0 + $0x30] sm:$0xf]
  %v73 = vld [vmem:[%s0 + $0x34] sm:$0xf]
  %v74 = vld [vmem:[%s0 + $0x38] sm:$0xf]
  %v75 = vld [vmem:[%s0 + $0x3c] sm:$0xf]
  %v76 = vld [vmem:[%s1] sm:$0xf]
  %v77 = vld [vmem:[%s1 + $0x4] sm:$0xf]
  %v78 = vld [vmem:[%s1 + $0x8] sm:$0xf]
  %v79 = vld [vmem:[%s1 + $0xc] sm:$0xf]
  %v80 = vld [vmem:[%s1 + $0x10] sm:$0xf]
  %v81 = vld [vmem:[%s1 + $0x14] sm:$0xf]
  %v82 = vld [vmem:[%s1 + $0x18] sm:$0xf]
  %v83 = vld [vmem:[%s1 + $0x1c] sm:$0xf]
  %v84 = vld [vmem:[%s1 + $0x20] sm:$0xf]
  %v85 = vld [vmem:[%s1 + $0x24] sm:$0xf]
  %v86 = vld [vmem:[%s1 + $0x28] sm:$0xf]
  %v87 = vld [vmem:[%s1 + $0x2c] sm:$0xf]
  %v88 = vld [vmem:[%s1 + $0x30] sm:$0xf]
  %v89 = vld [vmem:[%s1 + $0x34] sm:$0xf]
  %v90 = vld [vmem:[%s1 + $0x38] sm:$0xf]
  %v91 = vld [vmem:[%s1 + $0x3c] sm:$0xf]
  %v108 = vunpack.c.l.b16 %v60
  %v109 = vunpack.c.l.b16 %v61
  %v110 = vunpack.c.l.b16 %v62
  %v111 = vunpack.c.l.b16 %v63
  %v112 = vunpack.c.l.b16 %v64
  %v113 = vunpack.c.l.b16 %v65
  %v114 = vunpack.c.l.b16 %v66
  %v115 = vunpack.c.l.b16 %v67
  %v116 = vunpack.c.l.b16 %v68
  %v117 = vunpack.c.l.b16 %v69
  %v118 = vunpack.c.l.b16 %v70
  %v119 = vunpack.c.l.b16 %v71
  %v120 = vunpack.c.l.b16 %v72
  %v121 = vunpack.c.l.b16 %v73
  %v122 = vunpack.c.l.b16 %v74
  %v123 = vunpack.c.l.b16 %v75
  %v124 = vpack.c.b16 %v109, %v108
  %v125 = vpack.c.b16 %v111, %v110
  %v126 = vpack.c.b16 %v113, %v112
  %v127 = vpack.c.b16 %v115, %v114
  %v128 = vpack.c.b16 %v117, %v116
  %v129 = vpack.c.b16 %v119, %v118
  %v130 = vpack.c.b16 %v121, %v120
  %v131 = vpack.c.b16 %v123, %v122
  %v156 = vunpack.c.l.b16 %v76
  %v157 = vunpack.c.l.b16 %v77
  %v158 = vunpack.c.l.b16 %v78
  %v159 = vunpack.c.l.b16 %v79
  %v160 = vunpack.c.l.b16 %v80
  %v161 = vunpack.c.l.b16 %v81
  %v162 = vunpack.c.l.b16 %v82
  %v163 = vunpack.c.l.b16 %v83
  %v164 = vunpack.c.l.b16 %v84
  %v165 = vunpack.c.l.b16 %v85
  %v166 = vunpack.c.l.b16 %v86
  %v167 = vunpack.c.l.b16 %v87
  %v168 = vunpack.c.l.b16 %v88
  %v169 = vunpack.c.l.b16 %v89
  %v170 = vunpack.c.l.b16 %v90
  %v171 = vunpack.c.l.b16 %v91
  %v172 = vpack.c.b16 %v157, %v156
  %v173 = vpack.c.b16 %v159, %v158
  %v174 = vpack.c.b16 %v161, %v160
  %v175 = vpack.c.b16 %v163, %v162
  %v176 = vpack.c.b16 %v165, %v164
  %v177 = vpack.c.b16 %v167, %v166
  %v178 = vpack.c.b16 %v169, %v168
  %v179 = vpack.c.b16 %v171, %v170
  %188 = vmatprep.subr.bf16.mxu0 0
  %189 = vmatpush1.bf16.msra.mxu0 %v172
  %190 = vmatprep.subr.bf16.mxu0 0
  %191 = vmatpush1.bf16.msra.mxu0 %v173
  %192 = vmatprep.subr.bf16.mxu0 0
  %193 = vmatpush1.bf16.msra.mxu0 %v174
  %194 = vmatprep.subr.bf16.mxu0 0
  %195 = vmatpush1.bf16.msra.mxu0 %v175
  %196 = vmatprep.subr.bf16.mxu0 0
  %197 = vmatpush1.bf16.msra.mxu0 %v176
  %198 = vmatprep.subr.bf16.mxu0 0
  %199 = vmatpush1.bf16.msra.mxu0 %v177
  %200 = vmatprep.subr.bf16.mxu0 0
  %201 = vmatpush1.bf16.msra.mxu0 %v178
  %202 = vmatprep.subr.bf16.mxu0 0
  %203 = vmatpush1.bf16.msra.mxu0 %v179
  %204 = vmatprep.subr.bf16.mxu0 0
  %205 = vmatpush1.bf16.msra.mxu0 0
  %206 = vmatprep.subr.bf16.mxu0 0
  %207 = vmatpush1.bf16.msra.mxu0 0
  %208 = vmatprep.subr.bf16.mxu0 0
  %209 = vmatpush1.bf16.msra.mxu0 0
  %210 = vmatprep.subr.bf16.mxu0 0
  %211 = vmatpush1.bf16.msra.mxu0 0
  %212 = vmatprep.subr.bf16.mxu0 0
  %213 = vmatpush1.bf16.msra.mxu0 0
  %214 = vmatprep.subr.bf16.mxu0 0
  %215 = vmatpush1.bf16.msra.mxu0 0
  %216 = vmatprep.subr.bf16.mxu0 0
  %217 = vmatpush1.bf16.msra.mxu0 0
  %218 = vmatprep.subr.bf16.mxu0 0
  %219 = vmatpush1.bf16.msra.mxu0 0
  %220 = vmatprep.mubr.bf16.mxu0 0
  %221 = vmatmul.mubr.bf16.gmra.mrb[0].mxu0 %v124
  %v222 = vpop.f32.mrb[0].mxu0
  %v223 = vadd.f32 0.0, %v222
  %v224 = vpop.f32.mrb[0].mxu0
  %v225 = vpop.f32.mrb[0].mxu0
  %v226 = vadd.f32 0.0, %v225
  %v227 = vpop.f32.mrb[0].mxu0
  %228 = vmatprep.mubr.bf16.mxu0 0
  %229 = vmatmul.mubr.bf16.gmra.mrb[0].mxu0 %v125
  %v230 = vpop.f32.mrb[0].mxu0
  %v231 = vadd.f32 0.0, %v230
  %v232 = vpop.f32.mrb[0].mxu0
  %v233 = vpop.f32.mrb[0].mxu0
  %v234 = vadd.f32 0.0, %v233
  %v235 = vpop.f32.mrb[0].mxu0
  %236 = vmatprep.mubr.bf16.mxu0 0
  %237 = vmatmul.mubr.bf16.gmra.mrb[0].mxu0 %v126
  %v238 = vpop.f32.mrb[0].mxu0
  %v239 = vadd.f32 0.0, %v238
  %v240 = vpop.f32.mrb[0].mxu0
  %v241 = vpop.f32.mrb[0].mxu0
  %v242 = vadd.f32 0.0, %v241
  %v243 = vpop.f32.mrb[0].mxu0
  %244 = vmatprep.mubr.bf16.mxu0 0
  %245 = vmatmul.mubr.bf16.gmra.mrb[0].mxu0 %v127
  %v246 = vpop.f32.mrb[0].mxu0
  %v247 = vadd.f32 0.0, %v246
  %v248 = vpop.f32.mrb[0].mxu0
  %v249 = vpop.f32.mrb[0].mxu0
  %v250 = vadd.f32 0.0, %v249
  %v251 = vpop.f32.mrb[0].mxu0
  %252 = vmatprep.mubr.bf16.mxu0 0
  %253 = vmatmul.mubr.bf16.gmra.mrb[0].mxu0 %v128
  %v254 = vpop.f32.mrb[0].mxu0
  %v255 = vadd.f32 0.0, %v254
  %v256 = vpop.f32.mrb[0].mxu0
  %v257 = vpop.f32.mrb[0].mxu0
  %v258 = vadd.f32 0.0, %v257
  %v259 = vpop.f32.mrb[0].mxu0
  %260 = vmatprep.mubr.bf16.mxu0 0
  %261 = vmatmul.mubr.bf16.gmra.mrb[0].mxu0 %v129
  %v262 = vpop.f32.mrb[0].mxu0
  %v263 = vadd.f32 0.0, %v262
  %v264 = vpop.f32.mrb[0].mxu0
  %v265 = vpop.f32.mrb[0].mxu0
  %v266 = vadd.f32 0.0, %v265
  %v267 = vpop.f32.mrb[0].mxu0
  %268 = vmatprep.mubr.bf16.mxu0 0
  %269 = vmatmul.mubr.bf16.gmra.mrb[0].mxu0 %v130
  %v270 = vpop.f32.mrb[0].mxu0
  %v271 = vadd.f32 0.0, %v270
  %v272 = vpop.f32.mrb[0].mxu0
  %v273 = vpop.f32.mrb[0].mxu0
  %v274 = vadd.f32 0.0, %v273
  %v275 = vpop.f32.mrb[0].mxu0
  %276 = vmatprep.mubr.bf16.mxu0 0
  %277 = vmatmul.mubr.bf16.gmra.mrb[0].mxu0 %v131
  %v278 = vpop.f32.mrb[0].mxu0
  %v279 = vadd.f32 0.0, %v278
  %v280 = vpop.f32.mrb[0].mxu0
  %v281 = vpop.f32.mrb[0].mxu0
  %v282 = vadd.f32 0.0, %v281
  %v283 = vpop.f32.mrb[0].mxu0
  %284 = vdwg.mxu0
  %v285 = vadd.f32 %v44, %v223
  %v286 = vadd.f32 %v45, %v226
  %v287 = vadd.f32 %v46, %v231
  %v288 = vadd.f32 %v47, %v234
  %v289 = vadd.f32 %v48, %v239
  %v290 = vadd.f32 %v49, %v242
  %v291 = vadd.f32 %v50, %v247
  %v292 = vadd.f32 %v51, %v250
  %v293 = vadd.f32 %v52, %v255
  %v294 = vadd.f32 %v53, %v258
  %v295 = vadd.f32 %v54, %v263
  %v296 = vadd.f32 %v55, %v266
  %v297 = vadd.f32 %v56, %v271
  %v298 = vadd.f32 %v57, %v274
  %v299 = vadd.f32 %v58, %v279
  %v300 = vadd.f32 %v59, %v282
  %301 = vst [vmem:[#allocation2] sm:$0xff] %v285
  %302 = vst [vmem:[#allocation2 + $0x8] sm:$0xff] %v286
  %303 = vst [vmem:[#allocation2 + $0x10] sm:$0xff] %v287
  %304 = vst [vmem:[#allocation2 + $0x18] sm:$0xff] %v288
  %305 = vst [vmem:[#allocation2 + $0x20] sm:$0xff] %v289
  %306 = vst [vmem:[#allocation2 + $0x28] sm:$0xff] %v290
  %307 = vst [vmem:[#allocation2 + $0x30] sm:$0xff] %v291
  %308 = vst [vmem:[#allocation2 + $0x38] sm:$0xff] %v292
  %309 = vst [vmem:[#allocation2 + $0x40] sm:$0xff] %v293
  %310 = vst [vmem:[#allocation2 + $0x48] sm:$0xff] %v294
  %311 = vst [vmem:[#allocation2 + $0x50] sm:$0xff] %v295
  %312 = vst [vmem:[#allocation2 + $0x58] sm:$0xff] %v296
  %313 = vst [vmem:[#allocation2 + $0x60] sm:$0xff] %v297
  %314 = vst [vmem:[#allocation2 + $0x68] sm:$0xff] %v298
  %315 = vst [vmem:[#allocation2 + $0x70] sm:$0xff] %v299
  %316 = vst [vmem:[#allocation2 + $0x78] sm:$0xff] %v300
  // Predicated region
  $region30: #{sage_link_predictor_forward.4} parent=0 // pred_check
    %p317 = pneg %p24
  $region31: #{sage_link_predictor_forward.4} parent=0 // pred_check_branch
    %319 = sbr.rel (%p317) target = $region33
  $region32: #{sage_link_predictor_forward.4} parent=0 // pred_region
    %v320 = vld [vmem:[#allocation2] sm:$0xff]
    %v321 = vld [vmem:[#allocation2 + $0x8] sm:$0xff]
    %v322 = vld [vmem:[#allocation2 + $0x10] sm:$0xff]
    %v323 = vld [vmem:[#allocation2 + $0x18] sm:$0xff]
    %v324 = vld [vmem:[#allocation2 + $0x20] sm:$0xff]
    %v325 = vld [vmem:[#allocation2 + $0x28] sm:$0xff]
    %v326 = vld [vmem:[#allocation2 + $0x30] sm:$0xff]
    %v327 = vld [vmem:[#allocation2 + $0x38] sm:$0xff]
    %v328 = vld [vmem:[#allocation2 + $0x40] sm:$0xff]
    %v329 = vld [vmem:[#allocation2 + $0x48] sm:$0xff]
    %v330 = vld [vmem:[#allocation2 + $0x50] sm:$0xff]
    %v331 = vld [vmem:[#allocation2 + $0x58] sm:$0xff]
    %v332 = vld [vmem:[#allocation2 + $0x60] sm:$0xff]
    %v333 = vld [vmem:[#allocation2 + $0x68] sm:$0xff]
    %v334 = vld [vmem:[#allocation2 + $0x70] sm:$0xff]
    %v335 = vld [vmem:[#allocation2 + $0x78] sm:$0xff]
    %v336 = vld [vmem:[%s5] sm:$0xff]
    %v337 = vld [vmem:[%s5 + $0x8] sm:$0xff]
    %v338 = vld [vmem:[%s5 + $0x10] sm:$0xff]
    %v339 = vld [vmem:[%s5 + $0x18] sm:$0xff]
    %v340 = vld [vmem:[%s5 + $0x20] sm:$0xff]
    %v341 = vld [vmem:[%s5 + $0x28] sm:$0xff]
    %v342 = vld [vmem:[%s5 + $0x30] sm:$0xff]
    %v343 = vld [vmem:[%s5 + $0x38] sm:$0xff]
    %v344 = vld [vmem:[%s5 + $0x40] sm:$0xff]
    %v345 = vld [vmem:[%s5 + $0x48] sm:$0xff]
    %v346 = vld [vmem:[%s5 + $0x50] sm:$0xff]
    %v347 = vld [vmem:[%s5 + $0x58] sm:$0xff]
    %v348 = vld [vmem:[%s5 + $0x60] sm:$0xff]
    %v349 = vld [vmem:[%s5 + $0x68] sm:$0xff]
    %v350 = vld [vmem:[%s5 + $0x70] sm:$0xff]
    %v351 = vld [vmem:[%s5 + $0x78] sm:$0xff]
    %353 = vset.pattern.permute.xlu0 0
    %354 = vperm.xlu0 %353, %v336
    %v355 = vpop.permute.xlu0 %354
    %358 = vset.pattern.permute.xlu0 0
    %359 = vperm.xlu0 %358, %v337
    %v360 = vpop.permute.xlu0 %359
    %363 = vset.pattern.permute.xlu0 0
    %364 = vperm.xlu0 %363, %v338
    %v365 = vpop.permute.xlu0 %364
    %368 = vset.pattern.permute.xlu0 0
    %369 = vperm.xlu0 %368, %v339
    %v370 = vpop.permute.xlu0 %369
    %373 = vset.pattern.permute.xlu0 0
    %374 = vperm.xlu0 %373, %v340
    %v375 = vpop.permute.xlu0 %374
    %378 = vset.pattern.permute.xlu0 0
    %379 = vperm.xlu0 %378, %v341
    %v380 = vpop.permute.xlu0 %379
    %383 = vset.pattern.permute.xlu0 0
    %384 = vperm.xlu0 %383, %v342
    %v385 = vpop.permute.xlu0 %384
    %388 = vset.pattern.permute.xlu0 0
    %389 = vperm.xlu0 %388, %v343
    %v390 = vpop.permute.xlu0 %389
    %393 = vset.pattern.permute.xlu0 0
    %394 = vperm.xlu0 %393, %v344
    %v395 = vpop.permute.xlu0 %394
    %398 = vset.pattern.permute.xlu0 0
    %399 = vperm.xlu0 %398, %v345
    %v400 = vpop.permute.xlu0 %399
    %403 = vset.pattern.permute.xlu0 0
    %404 = vperm.xlu0 %403, %v346
    %v405 = vpop.permute.xlu0 %404
    %408 = vset.pattern.permute.xlu0 0
    %409 = vperm.xlu0 %408, %v347
    %v410 = vpop.permute.xlu0 %409
    %413 = vset.pattern.permute.xlu0 0
    %414 = vperm.xlu0 %413, %v348
    %v415 = vpop.permute.xlu0 %414
    %418 = vset.pattern.permute.xlu0 0
    %419 = vperm.xlu0 %418, %v349
    %v420 = vpop.permute.xlu0 %419
    %423 = vset.pattern.permute.xlu0 0
    %424 = vperm.xlu0 %423, %v350
    %v425 = vpop.permute.xlu0 %424
    %428 = vset.pattern.permute.xlu0 0
    %429 = vperm.xlu0 %428, %v351
    %v430 = vpop.permute.xlu0 %429
    %v432 = vmul.f32 %v320, %v355
    %v433 = vmul.f32 %v321, %v360
    %v434 = vmul.f32 %v322, %v365
    %v435 = vmul.f32 %v323, %v370
    %v436 = vmul.f32 %v324, %v375
    %v437 = vmul.f32 %v325, %v380
    %v438 = vmul.f32 %v326, %v385
    %v439 = vmul.f32 %v327, %v390
    %v440 = vmul.f32 %v328, %v395
    %v441 = vmul.f32 %v329, %v400
    %v442 = vmul.f32 %v330, %v405
    %v443 = vmul.f32 %v331, %v410
    %v444 = vmul.f32 %v332, %v415
    %v445 = vmul.f32 %v333, %v420
    %v446 = vmul.f32 %v334, %v425
    %v447 = vmul.f32 %v335, %v430
    %v448 = vpack.c.bf16 %v433, %v432
    %v449 = vpack.c.bf16 %v435, %v434
    %v450 = vpack.c.bf16 %v437, %v436
    %v451 = vpack.c.bf16 %v439, %v438
    %v452 = vpack.c.bf16 %v441, %v440
    %v453 = vpack.c.bf16 %v443, %v442
    %v454 = vpack.c.bf16 %v445, %v444
    %v455 = vpack.c.bf16 %v447, %v446
    %v456 = vld [vmem:[%s2] sm:$0xf]
    %v457 = vld [vmem:[%s2 + $0x4] sm:$0xf]
    %v458 = vld [vmem:[%s2 + $0x8] sm:$0xf]
    %v459 = vld [vmem:[%s2 + $0xc] sm:$0xf]
    %v460 = vld [vmem:[%s2 + $0x10] sm:$0xf]
    %v461 = vld [vmem:[%s2 + $0x14] sm:$0xf]
    %v462 = vld [vmem:[%s2 + $0x18] sm:$0xf]
    %v463 = vld [vmem:[%s2 + $0x1c] sm:$0xf]
    %v464 = vld [vmem:[%s2 + $0x20] sm:$0xf]
    %v465 = vld [vmem:[%s2 + $0x24] sm:$0xf]
    %v466 = vld [vmem:[%s2 + $0x28] sm:$0xf]
    %v467 = vld [vmem:[%s2 + $0x2c] sm:$0xf]
    %v468 = vld [vmem:[%s2 + $0x30] sm:$0xf]
    %v469 = vld [vmem:[%s2 + $0x34] sm:$0xf]
    %v470 = vld [vmem:[%s2 + $0x38] sm:$0xf]
    %v471 = vld [vmem:[%s2 + $0x3c] sm:$0xf]
    %v488 = vunpack.c.l.b16 %v456
    %v489 = vunpack.c.l.b16 %v457
    %v490 = vunpack.c.l.b16 %v458
    %v491 = vunpack.c.l.b16 %v459
    %v492 = vunpack.c.l.b16 %v460
    %v493 = vunpack.c.l.b16 %v461
    %v494 = vunpack.c.l.b16 %v462
    %v495 = vunpack.c.l.b16 %v463
    %v496 = vunpack.c.l.b16 %v464
    %v497 = vunpack.c.l.b16 %v465
    %v498 = vunpack.c.l.b16 %v466
    %v499 = vunpack.c.l.b16 %v467
    %v500 = vunpack.c.l.b16 %v468
    %v501 = vunpack.c.l.b16 %v469
    %v502 = vunpack.c.l.b16 %v470
    %v503 = vunpack.c.l.b16 %v471
    %v504 = vpack.c.b16 %v489, %v488
    %v505 = vpack.c.b16 %v491, %v490
    %v506 = vpack.c.b16 %v493, %v492
    %v507 = vpack.c.b16 %v495, %v494
    %v508 = vpack.c.b16 %v497, %v496
    %v509 = vpack.c.b16 %v499, %v498
    %v510 = vpack.c.b16 %v501, %v500
    %v511 = vpack.c.b16 %v503, %v502
    %v520 = vld [vmem:[%s3] sm:$0xf]
    %v521 = vld [vmem:[%s3 + $0x4] sm:$0xf]
    %v522 = vld [vmem:[%s3 + $0x8] sm:$0xf]
    %v523 = vld [vmem:[%s3 + $0xc] sm:$0xf]
    %v524 = vld [vmem:[%s3 + $0x10] sm:$0xf]
    %v525 = vld [vmem:[%s3 + $0x14] sm:$0xf]
    %v526 = vld [vmem:[%s3 + $0x18] sm:$0xf]
    %v527 = vld [vmem:[%s3 + $0x1c] sm:$0xf]
    %v528 = vld [vmem:[%s3 + $0x20] sm:$0xf]
    %v529 = vld [vmem:[%s3 + $0x24] sm:$0xf]
    %v530 = vld [vmem:[%s3 + $0x28] sm:$0xf]
    %v531 = vld [vmem:[%s3 + $0x2c] sm:$0xf]
    %v532 = vld [vmem:[%s3 + $0x30] sm:$0xf]
    %v533 = vld [vmem:[%s3 + $0x34] sm:$0xf]
    %v534 = vld [vmem:[%s3 + $0x38] sm:$0xf]
    %v535 = vld [vmem:[%s3 + $0x3c] sm:$0xf]
    %v536 = vld [vmem:[%s3 + $0x40] sm:$0xf]
    %v537 = vld [vmem:[%s3 + $0x44] sm:$0xf]
    %v538 = vld [vmem:[%s3 + $0x48] sm:$0xf]
    %v539 = vld [vmem:[%s3 + $0x4c] sm:$0xf]
    %v540 = vld [vmem:[%s3 + $0x50] sm:$0xf]
    %v541 = vld [vmem:[%s3 + $0x54] sm:$0xf]
    %v542 = vld [vmem:[%s3 + $0x58] sm:$0xf]
    %v543 = vld [vmem:[%s3 + $0x5c] sm:$0xf]
    %v544 = vld [vmem:[%s3 + $0x60] sm:$0xf]
    %v545 = vld [vmem:[%s3 + $0x64] sm:$0xf]
    %v546 = vld [vmem:[%s3 + $0x68] sm:$0xf]
    %v547 = vld [vmem:[%s3 + $0x6c] sm:$0xf]
    %v548 = vld [vmem:[%s3 + $0x70] sm:$0xf]
    %v549 = vld [vmem:[%s3 + $0x74] sm:$0xf]
    %v550 = vld [vmem:[%s3 + $0x78] sm:$0xf]
    %v551 = vld [vmem:[%s3 + $0x7c] sm:$0xf]
    %v552 = vld [vmem:[%s4] sm:$0x1]
    %v554 = vlaneseq
    %v555 = vshrl.u32 %v554, 7
    %v556 = vsub.s32 0, %v555
    %v557 = vrot.slane %v552, %v556
    %v591 = vunpack.c.l.b16 %v520
    %v592 = vunpack.c.l.b16 %v521
    %v593 = vunpack.c.l.b16 %v522
    %v594 = vunpack.c.l.b16 %v523
    %v595 = vunpack.c.l.b16 %v524
    %v596 = vunpack.c.l.b16 %v525
    %v597 = vunpack.c.l.b16 %v526
    %v598 = vunpack.c.l.b16 %v527
    %v599 = vunpack.c.l.b16 %v528
    %v600 = vunpack.c.l.b16 %v529
    %v601 = vunpack.c.l.b16 %v530
    %v602 = vunpack.c.l.b16 %v531
    %v603 = vunpack.c.l.b16 %v532
    %v604 = vunpack.c.l.b16 %v533
    %v605 = vunpack.c.l.b16 %v534
    %v606 = vunpack.c.l.b16 %v535
    %v607 = vunpack.c.l.b16 %v536
    %v608 = vunpack.c.l.b16 %v537
    %v609 = vunpack.c.l.b16 %v538
    %v610 = vunpack.c.l.b16 %v539
    %v611 = vunpack.c.l.b16 %v540
    %v612 = vunpack.c.l.b16 %v541
    %v613 = vunpack.c.l.b16 %v542
    %v614 = vunpack.c.l.b16 %v543
    %v615 = vunpack.c.l.b16 %v544
    %v616 = vunpack.c.l.b16 %v545
    %v617 = vunpack.c.l.b16 %v546
    %v618 = vunpack.c.l.b16 %v547
    %v619 = vunpack.c.l.b16 %v548
    %v620 = vunpack.c.l.b16 %v549
    %v621 = vunpack.c.l.b16 %v550
    %v622 = vunpack.c.l.b16 %v551
    %v623 = vpack.c.b16 %v592, %v591
    %v624 = vpack.c.b16 %v594, %v593
    %v625 = vpack.c.b16 %v596, %v595
    %v626 = vpack.c.b16 %v598, %v597
    %v627 = vpack.c.b16 %v600, %v599
    %v628 = vpack.c.b16 %v602, %v601
    %v629 = vpack.c.b16 %v604, %v603
    %v630 = vpack.c.b16 %v606, %v605
    %v631 = vpack.c.b16 %v608, %v607
    %v632 = vpack.c.b16 %v610, %v609
    %v633 = vpack.c.b16 %v612, %v611
    %v634 = vpack.c.b16 %v614, %v613
    %v635 = vpack.c.b16 %v616, %v615
    %v636 = vpack.c.b16 %v618, %v617
    %v637 = vpack.c.b16 %v620, %v619
    %v638 = vpack.c.b16 %v622, %v621
    %655 = vmatprep.subr.bf16.mxu0 0
    %656 = vmatpush1.bf16.msra.mxu0 %v623
    %657 = vmatprep.subr.bf16.mxu0 0
    %658 = vmatpush1.bf16.msra.mxu0 %v624
    %659 = vmatprep.subr.bf16.mxu0 0
    %660 = vmatpush1.bf16.msra.mxu0 %v625
    %661 = vmatprep.subr.bf16.mxu0 0
    %662 = vmatpush1.bf16.msra.mxu0 %v626
    %663 = vmatprep.subr.bf16.mxu0 0
    %664 = vmatpush1.bf16.msra.mxu0 %v627
    %665 = vmatprep.subr.bf16.mxu0 0
    %666 = vmatpush1.bf16.msra.mxu0 %v628
    %667 = vmatprep.subr.bf16.mxu0 0
    %668 = vmatpush1.bf16.msra.mxu0 %v629
    %669 = vmatprep.subr.bf16.mxu0 0
    %670 = vmatpush1.bf16.msra.mxu0 %v630
    %671 = vmatprep.subr.bf16.mxu0 0
    %672 = vmatpush1.bf16.msra.mxu0 %v631
    %673 = vmatprep.subr.bf16.mxu0 0
    %674 = vmatpush1.bf16.msra.mxu0 %v632
    %675 = vmatprep.subr.bf16.mxu0 0
    %676 = vmatpush1.bf16.msra.mxu0 %v633
    %677 = vmatprep.subr.bf16.mxu0 0
    %678 = vmatpush1.bf16.msra.mxu0 %v634
    %679 = vmatprep.subr.bf16.mxu0 0
    %680 = vmatpush1.bf16.msra.mxu0 %v635
    %681 = vmatprep.subr.bf16.mxu0 0
    %682 = vmatpush1.bf16.msra.mxu0 %v636
    %683 = vmatprep.subr.bf16.mxu0 0
    %684 = vmatpush1.bf16.msra.mxu0 %v637
    %685 = vmatprep.subr.bf16.mxu0 0
    %686 = vmatpush1.bf16.msra.mxu0 %v638
    %687 = vmatprep.mubr.bf16.mxu0 %v504
    %688 = vmatmul.mubr.bf16.gmra.mrb[0].mxu0 %v448
    %v689 = vpop.f32.mrb[0].mxu0
    %v690 = vadd.f32 %v557, %v689
    %v691 = vpop.f32.mrb[0].mxu0
    %v692 = vpop.f32.mrb[0].mxu0
    %v693 = vadd.f32 %v557, %v692
    %v694 = vpop.f32.mrb[0].mxu0
    %695 = vmatprep.mubr.bf16.mxu0 %v505
    %696 = vmatmul.mubr.bf16.gmra.mrb[0].mxu0 %v449
    %v697 = vpop.f32.mrb[0].mxu0
    %v698 = vadd.f32 %v557, %v697
    %v699 = vpop.f32.mrb[0].mxu0
    %v700 = vpop.f32.mrb[0].mxu0
    %v701 = vadd.f32 %v557, %v700
    %v702 = vpop.f32.mrb[0].mxu0
    %703 = vmatprep.mubr.bf16.mxu0 %v506
    %704 = vmatmul.mubr.bf16.gmra.mrb[0].mxu0 %v450
    %v705 = vpop.f32.mrb[0].mxu0
    %v706 = vadd.f32 %v557, %v705
    %v707 = vpop.f32.mrb[0].mxu0
    %v708 = vpop.f32.mrb[0].mxu0
    %v709 = vadd.f32 %v557, %v708
    %v710 = vpop.f32.mrb[0].mxu0
    %711 = vmatprep.mubr.bf16.mxu0 %v507
    %712 = vmatmul.mubr.bf16.gmra.mrb[0].mxu0 %v451
    %v713 = vpop.f32.mrb[0].mxu0
    %v714 = vadd.f32 %v557, %v713
    %v715 = vpop.f32.mrb[0].mxu0
    %v716 = vpop.f32.mrb[0].mxu0
    %v717 = vadd.f32 %v557, %v716
    %v718 = vpop.f32.mrb[0].mxu0
    %719 = vmatprep.mubr.bf16.mxu0 %v508
    %720 = vmatmul.mubr.bf16.gmra.mrb[0].mxu0 %v452
    %v721 = vpop.f32.mrb[0].mxu0
    %v722 = vadd.f32 %v557, %v721
    %v723 = vpop.f32.mrb[0].mxu0
    %v724 = vpop.f32.mrb[0].mxu0
    %v725 = vadd.f32 %v557, %v724
    %v726 = vpop.f32.mrb[0].mxu0
    %727 = vmatprep.mubr.bf16.mxu0 %v509
    %728 = vmatmul.mubr.bf16.gmra.mrb[0].mxu0 %v453
    %v729 = vpop.f32.mrb[0].mxu0
    %v730 = vadd.f32 %v557, %v729
    %v731 = vpop.f32.mrb[0].mxu0
    %v732 = vpop.f32.mrb[0].mxu0
    %v733 = vadd.f32 %v557, %v732
    %v734 = vpop.f32.mrb[0].mxu0
    %735 = vmatprep.mubr.bf16.mxu0 %v510
    %736 = vmatmul.mubr.bf16.gmra.mrb[0].mxu0 %v454
    %v737 = vpop.f32.mrb[0].mxu0
    %v738 = vadd.f32 %v557, %v737
    %v739 = vpop.f32.mrb[0].mxu0
    %v740 = vpop.f32.mrb[0].mxu0
    %v741 = vadd.f32 %v557, %v740
    %v742 = vpop.f32.mrb[0].mxu0
    %743 = vmatprep.mubr.bf16.mxu0 %v511
    %744 = vmatmul.mubr.bf16.gmra.mrb[0].mxu0 %v455
    %v745 = vpop.f32.mrb[0].mxu0
    %v746 = vadd.f32 %v557, %v745
    %v747 = vpop.f32.mrb[0].mxu0
    %v748 = vpop.f32.mrb[0].mxu0
    %v749 = vadd.f32 %v557, %v748
    %v750 = vpop.f32.mrb[0].mxu0
    %751 = vdwg.mxu0
    %v752 = vpack.c.bf16 %v693, %v690
    %v753 = vpack.c.bf16 %v701, %v698
    %v754 = vpack.c.bf16 %v709, %v706
    %v755 = vpack.c.bf16 %v717, %v714
    %v756 = vpack.c.bf16 %v725, %v722
    %v757 = vpack.c.bf16 %v733, %v730
    %v758 = vpack.c.bf16 %v741, %v738
    %v759 = vpack.c.bf16 %v749, %v746
    %v768 = vunpack.c.l.b16 %v752
    %v769 = vunpack.c.h.b16 %v752
    %v770 = vunpack.c.l.b16 %v753
    %v771 = vunpack.c.h.b16 %v753
    %v772 = vunpack.c.l.b16 %v754
    %v773 = vunpack.c.h.b16 %v754
    %v774 = vunpack.c.l.b16 %v755
    %v775 = vunpack.c.h.b16 %v755
    %v776 = vunpack.c.l.b16 %v756
    %v777 = vunpack.c.h.b16 %v756
    %v778 = vunpack.c.l.b16 %v757
    %v779 = vunpack.c.h.b16 %v757
    %v780 = vunpack.c.l.b16 %v758
    %v781 = vunpack.c.h.b16 %v758
    %v782 = vunpack.c.l.b16 %v759
    %v783 = vunpack.c.h.b16 %v759
    %v784 = vpack.c.b16 %v768, %v768
    %v785 = vpack.c.b16 %v769, %v769
    %v786 = vpack.c.b16 %v770, %v770
    %v787 = vpack.c.b16 %v771, %v771
    %v788 = vpack.c.b16 %v772, %v772
    %v789 = vpack.c.b16 %v773, %v773
    %v790 = vpack.c.b16 %v774, %v774
    %v791 = vpack.c.b16 %v775, %v775
    %v792 = vpack.c.b16 %v776, %v776
    %v793 = vpack.c.b16 %v777, %v777
    %v794 = vpack.c.b16 %v778, %v778
    %v795 = vpack.c.b16 %v779, %v779
    %v796 = vpack.c.b16 %v780, %v780
    %v797 = vpack.c.b16 %v781, %v781
    %v798 = vpack.c.b16 %v782, %v782
    %v799 = vpack.c.b16 %v783, %v783
    %816 = vst [vmem:[%s6] sm:$0xf] %v784
    %817 = vst [vmem:[%s6 + $0x4] sm:$0xf] %v785
    %818 = vst [vmem:[%s6 + $0x8] sm:$0xf] %v786
    %819 = vst [vmem:[%s6 + $0xc] sm:$0xf] %v787
    %820 = vst [vmem:[%s6 + $0x10] sm:$0xf] %v788
    %821 = vst [vmem:[%s6 + $0x14] sm:$0xf] %v789
    %822 = vst [vmem:[%s6 + $0x18] sm:$0xf] %v790
    %823 = vst [vmem:[%s6 + $0x1c] sm:$0xf] %v791
    %824 = vst [vmem:[%s6 + $0x20] sm:$0xf] %v792
    %825 = vst [vmem:[%s6 + $0x24] sm:$0xf] %v793
    %826 = vst [vmem:[%s6 + $0x28] sm:$0xf] %v794
    %827 = vst [vmem:[%s6 + $0x2c] sm:$0xf] %v795
    %828 = vst [vmem:[%s6 + $0x30] sm:$0xf] %v796
    %829 = vst [vmem:[%s6 + $0x34] sm:$0xf] %v797
    %830 = vst [vmem:[%s6 + $0x38] sm:$0xf] %v798
    %831 = vst [vmem:[%s6 + $0x3c] sm:$0xf] %v799
  $region33: #{sage_link_predictor_forward.4} parent=0 // pred_fallthru
    _
  // Predicated region
  $region34: #{sage_link_predictor_forward.4} parent=0 // pred_check
    _
  $region35: #{sage_link_predictor_forward.4} parent=0 // pred_check_branch
    %833 = sbr.rel (0) target = $region37
  $region36: #{sage_link_predictor_forward.4} parent=0 // pred_region
    _
  $region37: #{sage_link_predictor_forward.4} parent=0 // pred_fallthru
    _
  // Predicated region
  $region38: #{sage_link_predictor_forward.4} parent=0 // pred_check
    _
  $region39: #{sage_link_predictor_forward.4} parent=0 // pred_check_branch
    %835 = sbr.rel (0) target = $region41
  $region40: #{sage_link_predictor_forward.4} parent=0 // pred_region
    _
  $region41: #{sage_link_predictor_forward.4} parent=0 // pred_fallthru
    _

// kernel: sage_link_predictor_forward.5
$region0: #{sage_link_predictor_forward.5}
  #allocation0 [shape = 'u32[]', space=smem, size = 0x4, offset = 0x4, fixed_abs, tag = 'smem constant byte address 0x4 - core index']
  #allocation1 [shape = 'u32[144,128]{1,0:T(1,128)}', space=vmem, size = 0x12000, scoped, tag = 'internal scratch']
  #allocation2 [shape = 'f32[1,1]{1,0:T(1,128)S(1)}', space=vmem, size = 0x200, scoped, tag = 'scoped memory for sage_link_predictor_forward.5']
  %s0 = inlined_call_operand.vmem [shape: bf16[128,256], index: 0, kind: input, shape index: {}]
  %s1 = inlined_call_operand.vmem [shape: bf16[256,128], index: 1, kind: input, shape index: {}]
  %s2 = inlined_call_operand.vmem [shape: f32[1,128], index: 2, kind: input, shape index: {}]
  %s3 = inlined_call_operand.vmem [shape: bf16[1,128], index: 3, kind: input, shape index: {}]
  %s4 = inlined_call_operand.<no memory space> [shape: f32[1,1], index: 4, kind: input, shape index: {}]
  %s5 = inlined_call_operand.vmem [shape: f32[1,128], index: 5, kind: output, shape index: {}]
  %s6 = sld [smem:[#allocation0]]
  $region30: #{sage_link_predictor_forward.5} parent=0
    _
  %s8 = ssub.s32 1, %s6
  %s9 = scalar_select 0, %s8, %s6
  %v10 = vstv %s4
  %11 = vst [vmem:[#allocation2] sm:$0x1] %v10
  // Predicated region
  $region2: #{sage_link_predictor_forward.5} parent=0 // pred_check
    _
  $region3: #{sage_link_predictor_forward.5} parent=0 // pred_check_branch
    %13 = sbr.rel (0) target = $region5
  $region4: #{sage_link_predictor_forward.5} parent=0 // pred_region
    _
  $region5: #{sage_link_predictor_forward.5} parent=0 // pred_fallthru
    _
  // Predicated region
  $region6: #{sage_link_predictor_forward.5} parent=0 // pred_check
    _
  $region7: #{sage_link_predictor_forward.5} parent=0 // pred_check_branch
    %15 = sbr.rel (0) target = $region9
  $region8: #{sage_link_predictor_forward.5} parent=0 // pred_region
    _
  $region9: #{sage_link_predictor_forward.5} parent=0 // pred_fallthru
    _
  // Predicated region
  $region10: #{sage_link_predictor_forward.5} parent=0 // pred_check
    _
  $region11: #{sage_link_predictor_forward.5} parent=0 // pred_check_branch
    %17 = sbr.rel (0) target = $region13
  $region12: #{sage_link_predictor_forward.5} parent=0 // pred_region
    _
  $region13: #{sage_link_predictor_forward.5} parent=0 // pred_fallthru
    _
  // Predicated region
  $region14: #{sage_link_predictor_forward.5} parent=0 // pred_check
    _
  $region15: #{sage_link_predictor_forward.5} parent=0 // pred_check_branch
    %19 = sbr.rel (0) target = $region17
  $region16: #{sage_link_predictor_forward.5} parent=0 // pred_region
    _
  $region17: #{sage_link_predictor_forward.5} parent=0 // pred_fallthru
    _
  // Predicated region
  $region18: #{sage_link_predictor_forward.5} parent=0 // pred_check
    _
  $region19: #{sage_link_predictor_forward.5} parent=0 // pred_check_branch
    %21 = sbr.rel (0) target = $region21
  $region20: #{sage_link_predictor_forward.5} parent=0 // pred_region
    _
  $region21: #{sage_link_predictor_forward.5} parent=0 // pred_fallthru
    _
  %v23 = vld [vmem:[%s0] sm:$0xff]
  %v24 = vld [vmem:[%s0 + $0x8] sm:$0xff]
  %v25 = vld [vmem:[%s0 + $0x10] sm:$0xff]
  %v26 = vld [vmem:[%s0 + $0x18] sm:$0xff]
  %v27 = vld [vmem:[%s0 + $0x20] sm:$0xff]
  %v28 = vld [vmem:[%s0 + $0x28] sm:$0xff]
  %v29 = vld [vmem:[%s0 + $0x30] sm:$0xff]
  %v30 = vld [vmem:[%s0 + $0x38] sm:$0xff]
  %v31 = vld [vmem:[%s0 + $0x40] sm:$0xff]
  %v32 = vld [vmem:[%s0 + $0x48] sm:$0xff]
  %v33 = vld [vmem:[%s0 + $0x50] sm:$0xff]
  %v34 = vld [vmem:[%s0 + $0x58] sm:$0xff]
  %v35 = vld [vmem:[%s0 + $0x60] sm:$0xff]
  %v36 = vld [vmem:[%s0 + $0x68] sm:$0xff]
  %v37 = vld [vmem:[%s0 + $0x70] sm:$0xff]
  %v38 = vld [vmem:[%s0 + $0x78] sm:$0xff]
  %v39 = vld [vmem:[%s1] sm:$0xf]
  %v40 = vld [vmem:[%s1 + $0x4] sm:$0xf]
  %v41 = vld [vmem:[%s1 + $0x8] sm:$0xf]
  %v42 = vld [vmem:[%s1 + $0xc] sm:$0xf]
  %v43 = vld [vmem:[%s1 + $0x10] sm:$0xf]
  %v44 = vld [vmem:[%s1 + $0x14] sm:$0xf]
  %v45 = vld [vmem:[%s1 + $0x18] sm:$0xf]
  %v46 = vld [vmem:[%s1 + $0x1c] sm:$0xf]
  %v47 = vld [vmem:[%s1 + $0x20] sm:$0xf]
  %v48 = vld [vmem:[%s1 + $0x24] sm:$0xf]
  %v49 = vld [vmem:[%s1 + $0x28] sm:$0xf]
  %v50 = vld [vmem:[%s1 + $0x2c] sm:$0xf]
  %v51 = vld [vmem:[%s1 + $0x30] sm:$0xf]
  %v52 = vld [vmem:[%s1 + $0x34] sm:$0xf]
  %v53 = vld [vmem:[%s1 + $0x38] sm:$0xf]
  %v54 = vld [vmem:[%s1 + $0x3c] sm:$0xf]
  %v55 = vld [vmem:[%s1 + $0x40] sm:$0xf]
  %v56 = vld [vmem:[%s1 + $0x44] sm:$0xf]
  %v57 = vld [vmem:[%s1 + $0x48] sm:$0xf]
  %v58 = vld [vmem:[%s1 + $0x4c] sm:$0xf]
  %v59 = vld [vmem:[%s1 + $0x50] sm:$0xf]
  %v60 = vld [vmem:[%s1 + $0x54] sm:$0xf]
  %v61 = vld [vmem:[%s1 + $0x58] sm:$0xf]
  %v62 = vld [vmem:[%s1 + $0x5c] sm:$0xf]
  %v63 = vld [vmem:[%s1 + $0x60] sm:$0xf]
  %v64 = vld [vmem:[%s1 + $0x64] sm:$0xf]
  %v65 = vld [vmem:[%s1 + $0x68] sm:$0xf]
  %v66 = vld [vmem:[%s1 + $0x6c] sm:$0xf]
  %v67 = vld [vmem:[%s1 + $0x70] sm:$0xf]
  %v68 = vld [vmem:[%s1 + $0x74] sm:$0xf]
  %v69 = vld [vmem:[%s1 + $0x78] sm:$0xf]
  %v70 = vld [vmem:[%s1 + $0x7c] sm:$0xf]
  %v71 = vld [vmem:[%s2] sm:$0x1]
  %v73 = vlaneseq
  %v74 = vshrl.u32 %v73, 7
  %v75 = vsub.s32 0, %v74
  %v76 = vrot.slane %v71, %v75
  %v94 = vunpack.c.l.b16 %v23
  %v95 = vunpack.c.h.b16 %v23
  %v96 = vunpack.c.l.b16 %v24
  %v97 = vunpack.c.h.b16 %v24
  %v98 = vunpack.c.l.b16 %v25
  %v99 = vunpack.c.h.b16 %v25
  %v100 = vunpack.c.l.b16 %v26
  %v101 = vunpack.c.h.b16 %v26
  %v102 = vunpack.c.l.b16 %v27
  %v103 = vunpack.c.h.b16 %v27
  %v104 = vunpack.c.l.b16 %v28
  %v105 = vunpack.c.h.b16 %v28
  %v106 = vunpack.c.l.b16 %v29
  %v107 = vunpack.c.h.b16 %v29
  %v108 = vunpack.c.l.b16 %v30
  %v109 = vunpack.c.h.b16 %v30
  %v110 = vunpack.c.l.b16 %v31
  %v111 = vunpack.c.h.b16 %v31
  %v112 = vunpack.c.l.b16 %v32
  %v113 = vunpack.c.h.b16 %v32
  %v114 = vunpack.c.l.b16 %v33
  %v115 = vunpack.c.h.b16 %v33
  %v116 = vunpack.c.l.b16 %v34
  %v117 = vunpack.c.h.b16 %v34
  %v118 = vunpack.c.l.b16 %v35
  %v119 = vunpack.c.h.b16 %v35
  %v120 = vunpack.c.l.b16 %v36
  %v121 = vunpack.c.h.b16 %v36
  %v122 = vunpack.c.l.b16 %v37
  %v123 = vunpack.c.h.b16 %v37
  %v124 = vunpack.c.l.b16 %v38
  %v125 = vunpack.c.h.b16 %v38
  %v126 = vpack.c.b16 %v96, %v94
  %v127 = vpack.c.b16 %v97, %v95
  %v128 = vpack.c.b16 %v100, %v98
  %v129 = vpack.c.b16 %v101, %v99
  %v130 = vpack.c.b16 %v104, %v102
  %v131 = vpack.c.b16 %v105, %v103
  %v132 = vpack.c.b16 %v108, %v106
  %v133 = vpack.c.b16 %v109, %v107
  %v134 = vpack.c.b16 %v112, %v110
  %v135 = vpack.c.b16 %v113, %v111
  %v136 = vpack.c.b16 %v116, %v114
  %v137 = vpack.c.b16 %v117, %v115
  %v138 = vpack.c.b16 %v120, %v118
  %v139 = vpack.c.b16 %v121, %v119
  %v140 = vpack.c.b16 %v124, %v122
  %v141 = vpack.c.b16 %v125, %v123
  %v190 = vunpack.c.l.b16 %v39
  %v191 = vunpack.c.l.b16 %v40
  %v192 = vunpack.c.l.b16 %v41
  %v193 = vunpack.c.l.b16 %v42
  %v194 = vunpack.c.l.b16 %v43
  %v195 = vunpack.c.l.b16 %v44
  %v196 = vunpack.c.l.b16 %v45
  %v197 = vunpack.c.l.b16 %v46
  %v198 = vunpack.c.l.b16 %v47
  %v199 = vunpack.c.l.b16 %v48
  %v200 = vunpack.c.l.b16 %v49
  %v201 = vunpack.c.l.b16 %v50
  %v202 = vunpack.c.l.b16 %v51
  %v203 = vunpack.c.l.b16 %v52
  %v204 = vunpack.c.l.b16 %v53
  %v205 = vunpack.c.l.b16 %v54
  %v206 = vunpack.c.l.b16 %v55
  %v207 = vunpack.c.l.b16 %v56
  %v208 = vunpack.c.l.b16 %v57
  %v209 = vunpack.c.l.b16 %v58
  %v210 = vunpack.c.l.b16 %v59
  %v211 = vunpack.c.l.b16 %v60
  %v212 = vunpack.c.l.b16 %v61
  %v213 = vunpack.c.l.b16 %v62
  %v214 = vunpack.c.l.b16 %v63
  %v215 = vunpack.c.l.b16 %v64
  %v216 = vunpack.c.l.b16 %v65
  %v217 = vunpack.c.l.b16 %v66
  %v218 = vunpack.c.l.b16 %v67
  %v219 = vunpack.c.l.b16 %v68
  %v220 = vunpack.c.l.b16 %v69
  %v221 = vunpack.c.l.b16 %v70
  %v222 = vpack.c.b16 %v191, %v190
  %v223 = vpack.c.b16 %v193, %v192
  %v224 = vpack.c.b16 %v195, %v194
  %v225 = vpack.c.b16 %v197, %v196
  %v226 = vpack.c.b16 %v199, %v198
  %v227 = vpack.c.b16 %v201, %v200
  %v228 = vpack.c.b16 %v203, %v202
  %v229 = vpack.c.b16 %v205, %v204
  %v230 = vpack.c.b16 %v207, %v206
  %v231 = vpack.c.b16 %v209, %v208
  %v232 = vpack.c.b16 %v211, %v210
  %v233 = vpack.c.b16 %v213, %v212
  %v234 = vpack.c.b16 %v215, %v214
  %v235 = vpack.c.b16 %v217, %v216
  %v236 = vpack.c.b16 %v219, %v218
  %v237 = vpack.c.b16 %v221, %v220
  %254 = vmatprep.subr.bf16.mxu0 0
  %255 = vmatpush1.bf16.msra.mxu0 %v222
  %256 = vmatprep.subr.bf16.mxu0 0
  %257 = vmatpush1.bf16.msra.mxu0 %v223
  %258 = vmatprep.subr.bf16.mxu0 0
  %259 = vmatpush1.bf16.msra.mxu0 %v224
  %260 = vmatprep.subr.bf16.mxu0 0
  %261 = vmatpush1.bf16.msra.mxu0 %v225
  %262 = vmatprep.subr.bf16.mxu0 0
  %263 = vmatpush1.bf16.msra.mxu0 %v226
  %264 = vmatprep.subr.bf16.mxu0 0
  %265 = vmatpush1.bf16.msra.mxu0 %v227
  %266 = vmatprep.subr.bf16.mxu0 0
  %267 = vmatpush1.bf16.msra.mxu0 %v228
  %268 = vmatprep.subr.bf16.mxu0 0
  %269 = vmatpush1.bf16.msra.mxu0 %v229
  %270 = vmatprep.subr.bf16.mxu0 0
  %271 = vmatpush1.bf16.msra.mxu0 %v230
  %272 = vmatprep.subr.bf16.mxu0 0
  %273 = vmatpush1.bf16.msra.mxu0 %v231
  %274 = vmatprep.subr.bf16.mxu0 0
  %275 = vmatpush1.bf16.msra.mxu0 %v232
  %276 = vmatprep.subr.bf16.mxu0 0
  %277 = vmatpush1.bf16.msra.mxu0 %v233
  %278 = vmatprep.subr.bf16.mxu0 0
  %279 = vmatpush1.bf16.msra.mxu0 %v234
  %280 = vmatprep.subr.bf16.mxu0 0
  %281 = vmatpush1.bf16.msra.mxu0 %v235
  %282 = vmatprep.subr.bf16.mxu0 0
  %283 = vmatpush1.bf16.msra.mxu0 %v236
  %284 = vmatprep.subr.bf16.mxu0 0
  %285 = vmatpush1.bf16.msra.mxu0 %v237
  %286 = vmatprep.mubr.bf16.mxu0 %v127
  %287 = vmatmul.mubr.bf16.gmra.mrb[0].mxu0 %v126
  %v288 = vpop.f32.mrb[0].mxu0
  %v289 = vadd.f32 %v76, %v288
  %v290 = vpop.f32.mrb[0].mxu0
  %v291 = vpop.f32.mrb[0].mxu0
  %v292 = vadd.f32 %v76, %v291
  %v293 = vpop.f32.mrb[0].mxu0
  %294 = vmatprep.mubr.bf16.mxu0 %v129
  %295 = vmatmul.mubr.bf16.gmra.mrb[0].mxu0 %v128
  %v296 = vpop.f32.mrb[0].mxu0
  %v297 = vadd.f32 %v76, %v296
  %v298 = vpop.f32.mrb[0].mxu0
  %v299 = vpop.f32.mrb[0].mxu0
  %v300 = vadd.f32 %v76, %v299
  %v301 = vpop.f32.mrb[0].mxu0
  %302 = vmatprep.mubr.bf16.mxu0 %v131
  %303 = vmatmul.mubr.bf16.gmra.mrb[0].mxu0 %v130
  %v304 = vpop.f32.mrb[0].mxu0
  %v305 = vadd.f32 %v76, %v304
  %v306 = vpop.f32.mrb[0].mxu0
  %v307 = vpop.f32.mrb[0].mxu0
  %v308 = vadd.f32 %v76, %v307
  %v309 = vpop.f32.mrb[0].mxu0
  %310 = vmatprep.mubr.bf16.mxu0 %v133
  %311 = vmatmul.mubr.bf16.gmra.mrb[0].mxu0 %v132
  %v312 = vpop.f32.mrb[0].mxu0
  %v313 = vadd.f32 %v76, %v312
  %v314 = vpop.f32.mrb[0].mxu0
  %v315 = vpop.f32.mrb[0].mxu0
  %v316 = vadd.f32 %v76, %v315
  %v317 = vpop.f32.mrb[0].mxu0
  %318 = vmatprep.mubr.bf16.mxu0 %v135
  %319 = vmatmul.mubr.bf16.gmra.mrb[0].mxu0 %v134
  %v320 = vpop.f32.mrb[0].mxu0
  %v321 = vadd.f32 %v76, %v320
  %v322 = vpop.f32.mrb[0].mxu0
  %v323 = vpop.f32.mrb[0].mxu0
  %v324 = vadd.f32 %v76, %v323
  %v325 = vpop.f32.mrb[0].mxu0
  %326 = vmatprep.mubr.bf16.mxu0 %v137
  %327 = vmatmul.mubr.bf16.gmra.mrb[0].mxu0 %v136
  %v328 = vpop.f32.mrb[0].mxu0
  %v329 = vadd.f32 %v76, %v328
  %v330 = vpop.f32.mrb[0].mxu0
  %v331 = vpop.f32.mrb[0].mxu0
  %v332 = vadd.f32 %v76, %v331
  %v333 = vpop.f32.mrb[0].mxu0
  %334 = vmatprep.mubr.bf16.mxu0 %v139
  %335 = vmatmul.mubr.bf16.gmra.mrb[0].mxu0 %v138
  %v336 = vpop.f32.mrb[0].mxu0
  %v337 = vadd.f32 %v76, %v336
  %v338 = vpop.f32.mrb[0].mxu0
  %v339 = vpop.f32.mrb[0].mxu0
  %v340 = vadd.f32 %v76, %v339
  %v341 = vpop.f32.mrb[0].mxu0
  %342 = vmatprep.mubr.bf16.mxu0 %v141
  %343 = vmatmul.mubr.bf16.gmra.mrb[0].mxu0 %v140
  %v344 = vpop.f32.mrb[0].mxu0
  %v345 = vadd.f32 %v76, %v344
  %v346 = vpop.f32.mrb[0].mxu0
  %v347 = vpop.f32.mrb[0].mxu0
  %v348 = vadd.f32 %v76, %v347
  %v349 = vpop.f32.mrb[0].mxu0
  %350 = vdwg.mxu0
  %v351 = vmax.f32 %v289, 0.0
  %v352 = vmax.f32 %v292, 0.0
  %v353 = vmax.f32 %v297, 0.0
  %v354 = vmax.f32 %v300, 0.0
  %v355 = vmax.f32 %v305, 0.0
  %v356 = vmax.f32 %v308, 0.0
  %v357 = vmax.f32 %v313, 0.0
  %v358 = vmax.f32 %v316, 0.0
  %v359 = vmax.f32 %v321, 0.0
  %v360 = vmax.f32 %v324, 0.0
  %v361 = vmax.f32 %v329, 0.0
  %v362 = vmax.f32 %v332, 0.0
  %v363 = vmax.f32 %v337, 0.0
  %v364 = vmax.f32 %v340, 0.0
  %v365 = vmax.f32 %v345, 0.0
  %v366 = vmax.f32 %v348, 0.0
  %v367 = vpack.c.bf16 %v352, %v351
  %v368 = vpack.c.bf16 %v354, %v353
  %v369 = vpack.c.bf16 %v356, %v355
  %v370 = vpack.c.bf16 %v358, %v357
  %v371 = vpack.c.bf16 %v360, %v359
  %v372 = vpack.c.bf16 %v362, %v361
  %v373 = vpack.c.bf16 %v364, %v363
  %v374 = vpack.c.bf16 %v366, %v365
  %v375 = vld [vmem:[%s3] sm:$0x1]
  %v376 = vld [vmem:[#allocation2] sm:$0x1]
  %378 = vset.pattern.permute.xlu0 0
  %379 = vperm.xlu0 %378, %v376
  %v380 = vpop.permute.xlu0 %379
  %v382 = vlaneseq
  %v383 = vshrl.u32 %v382, 7
  %v384 = vsub.s32 0, %v383
  %v385 = vrot.slane %v380, %v384
  %386 = vmatprep.subr.bf16.mxu0 0
  %387 = vmatpush1.bf16.xpose.msra.mxu0 %v367
  %388 = vmatprep.subr.bf16.mxu0 0
  %389 = vmatpush1.bf16.xpose.msra.mxu0 %v368
  %390 = vmatprep.subr.bf16.mxu0 0
  %391 = vmatpush1.bf16.xpose.msra.mxu0 %v369
  %392 = vmatprep.subr.bf16.mxu0 0
  %393 = vmatpush1.bf16.xpose.msra.mxu0 %v370
  %394 = vmatprep.subr.bf16.mxu0 0
  %395 = vmatpush1.bf16.xpose.msra.mxu0 %v371
  %396 = vmatprep.subr.bf16.mxu0 0
  %397 = vmatpush1.bf16.xpose.msra.mxu0 %v372
  %398 = vmatprep.subr.bf16.mxu0 0
  %399 = vmatpush1.bf16.xpose.msra.mxu0 %v373
  %400 = vmatprep.subr.bf16.mxu0 0
  %401 = vmatpush1.bf16.xpose.msra.mxu0 %v374
  %402 = vmatprep.subr.bf16.mxu0 0
  %403 = vmatpush1.bf16.xpose.msra.mxu0 0
  %404 = vmatprep.subr.bf16.mxu0 0
  %405 = vmatpush1.bf16.xpose.msra.mxu0 0
  %406 = vmatprep.subr.bf16.mxu0 0
  %407 = vmatpush1.bf16.xpose.msra.mxu0 0
  %408 = vmatprep.subr.bf16.mxu0 0
  %409 = vmatpush1.bf16.xpose.msra.mxu0 0
  %410 = vmatprep.subr.bf16.mxu0 0
  %411 = vmatpush1.bf16.xpose.msra.mxu0 0
  %412 = vmatprep.subr.bf16.mxu0 0
  %413 = vmatpush1.bf16.xpose.msra.mxu0 0
  %414 = vmatprep.subr.bf16.mxu0 0
  %415 = vmatpush1.bf16.xpose.msra.mxu0 0
  %416 = vmatprep.subr.bf16.mxu0 0
  %417 = vmatpush1.bf16.xpose.msra.mxu0 0
  %418 = vmatprep.mubr.bf16.mxu0 0
  %419 = vmatmul.mubr.bf16.gmra.mrb[0].mxu0 %v375
  %v420 = vpop.f32.mrb[0].mxu0
  %v421 = vadd.f32 %v385, %v420
  %v422 = vpop.f32.mrb[0].mxu0
  %v423 = vpop.f32.mrb[0].mxu0
  %v424 = vpop.f32.mrb[0].mxu0
  %425 = vdwg.mxu0
  %v426 = vxor.u32 %v421, 2147483648
  %v427 = vmul.f32 %v426, 1.442695
  %v428 = vpow.pop %v427
  %v429 = vadd.f32 %v428, 1.0
  %v430 = vrcp.pop %v429
  %v431 = vmul.f32 1.0, %v430
  %432 = vst [vmem:[%s5] sm:$0x1] %v431
  // Predicated region
  $region22: #{sage_link_predictor_forward.5} parent=0 // pred_check
    _
  $region23: #{sage_link_predictor_forward.5} parent=0 // pred_check_branch
    %434 = sbr.rel (0) target = $region25
  $region24: #{sage_link_predictor_forward.5} parent=0 // pred_region
    _
  $region25: #{sage_link_predictor_forward.5} parent=0 // pred_fallthru
    _
  // Predicated region
  $region26: #{sage_link_predictor_forward.5} parent=0 // pred_check
    _
  $region27: #{sage_link_predictor_forward.5} parent=0 // pred_check_branch
    %436 = sbr.rel (0) target = $region29
  $region28: #{sage_link_predictor_forward.5} parent=0 // pred_region
    _
  $region29: #{sage_link_predictor_forward.5} parent=0 // pred_fallthru
    _

</llo_original>
